<compile_context>
chip_gen: v5e
topology: v5e:2x2
jax: 0.10.0
libtpu: 0.0.40
codegen_flags: <defaults>
</compile_context>

<pallas_src>
import jax
import jax.numpy as jnp
import numpy as np
from jax import lax
from jax.experimental import pallas as pl
from jax.experimental.pallas import tpu as pltpu

LEAKY_SLOPE = 0.2
BN_EPS = 1e-5


# ---------------------------------------------------------------------------
# JAX glue (layout only, no heavy compute)
# ---------------------------------------------------------------------------
def space_to_depth2(xp):
    """(N, Hp, Wp, C), Hp/Wp even -> (N, Hp//2, Wp//2, 4C); channel order (ph, pw, c)."""
    N, Hp, Wp, C = xp.shape
    x = xp.reshape(N, Hp // 2, 2, Wp // 2, 2, C)
    x = jnp.transpose(x, (0, 1, 3, 2, 4, 5))
    return x.reshape(N, Hp // 2, Wp // 2, 4 * C)


def pad_and_s2d(x, pad_value=None):
    """Pad H/W by 1 (zeros or per-channel value) then space-to-depth by 2."""
    N, H, W, C = x.shape
    if pad_value is None:
        xp = jnp.pad(x, ((0, 0), (1, 1), (1, 1), (0, 0)))
    else:
        xp = jnp.broadcast_to(pad_value.astype(x.dtype).reshape(1, 1, 1, C),
                              (N, H + 2, W + 2, C))
        xp = xp.at[:, 1:H + 1, 1:W + 1, :].set(x)
    return space_to_depth2(xp)


def regroup_weight_s2(w):
    """HWIO (4,4,Cin,F) -> (4, 4*Cin, F): tap t=2*dh+dw, contraction order (ph, pw, c)."""
    _, _, Cin, F = w.shape
    wg = w.reshape(2, 2, 2, 2, Cin, F)            # (dh, ph, dw, pw, Cin, F)
    wg = jnp.transpose(wg, (0, 2, 1, 3, 4, 5))    # (dh, dw, ph, pw, Cin, F)
    return wg.reshape(4, 4 * Cin, F)


def bn_scale_shift(sum_per_img, ssq_per_img, count):
    """Per-channel scale/shift so y_norm = y*scale + shift = (y-mean)*rsqrt(var+eps)."""
    s = jnp.sum(sum_per_img, axis=(0, 1))         # (F,)
    ss = jnp.sum(ssq_per_img, axis=(0, 1))
    mean = s / count
    var = ss / count - mean * mean                # biased variance (training-mode BN)
    # TODO(synk): shifted/Welford sums if E[x^2]-E[x]^2 cancellation ever bites.
    mean = mean.astype(jnp.bfloat16).astype(jnp.float32)   # match the bf16 pad value
    scale = lax.rsqrt(var + BN_EPS)
    shift = -mean * scale
    return mean, scale, shift


# ---------------------------------------------------------------------------
# Pallas kernels
# ---------------------------------------------------------------------------
def conv4x4_s2(xs, wg, *, scale=None, shift=None, epilogue="none", with_stats=False):
    """4x4 / stride-2 / pad-1 conv as 4 tap matmuls on the space-to-depth input.

    xs: (N, OH+1, OW+1, C4) bf16, wg: (4, C4, F) bf16.
    Optional fused prologue  y = leaky(x*scale + shift)  (deferred BatchNorm of
    the previous layer), optional 'leaky' epilogue, optional per-image
    sum / sum-of-squares outputs (for the next layer's deferred BatchNorm).
    """
    N, OHp, OWp, C4 = xs.shape
    _, _, F = wg.shape
    OH, OW = OHp - 1, OWp - 1
    with_prologue = scale is not None
    taps = ((0, 0), (0, 1), (1, 0), (1, 1))

    def kernel(*refs):
        if with_prologue:
            sc_ref, sh_ref, x_ref, w_ref = refs[:4]
            orefs = refs[4:]
        else:
            x_ref, w_ref = refs[:2]
            orefs = refs[2:]
        if with_stats:
            y_ref, sum_ref, ssq_ref = orefs
            sum_ref[...] = jnp.zeros_like(sum_ref)
            ssq_ref[...] = jnp.zeros_like(ssq_ref)
        else:
            (y_ref,) = orefs

        @pl.loop(0, OH)
        def _(oh):
            acc = jnp.zeros((OW, F), jnp.float32)
            for t, (dh, dw) in enumerate(taps):
                a = x_ref[oh + dh, dw:dw + OW, :]            # (OW, C4) bf16
                if with_prologue:
                    af = a.astype(jnp.float32) * sc_ref[...] + sh_ref[...]
                    a = jnp.where(af > 0, af, LEAKY_SLOPE * af).astype(jnp.bfloat16)
                acc = acc + jnp.dot(a, w_ref[t],
                                    preferred_element_type=jnp.float32)
            if epilogue == "leaky":
                acc = jnp.where(acc > 0, acc, LEAKY_SLOPE * acc)
            y_ref[oh] = acc.astype(y_ref.dtype)
            if with_stats:
                sum_ref[...] += jnp.sum(acc, axis=0, keepdims=True)
                ssq_ref[...] += jnp.sum(acc * acc, axis=0, keepdims=True)

    in_specs, operands = [], []
    if with_prologue:
        in_specs += [pl.BlockSpec((1, C4), lambda i: (0, 0)),
                     pl.BlockSpec((1, C4), lambda i: (0, 0))]
        operands += [scale.reshape(1, C4).astype(jnp.float32),
                     shift.reshape(1, C4).astype(jnp.float32)]
    in_specs += [pl.BlockSpec((None, OHp, OWp, C4), lambda i: (i, 0, 0, 0)),
                 pl.BlockSpec((4, C4, F), lambda i: (0, 0, 0))]
    operands += [xs.astype(jnp.bfloat16), wg.astype(jnp.bfloat16)]

    y_spec = pl.BlockSpec((None, OH, OW, F), lambda i: (i, 0, 0, 0))
    if with_stats:
        out_shape = (jax.ShapeDtypeStruct((N, OH, OW, F), jnp.bfloat16),
                     jax.ShapeDtypeStruct((N, 1, F), jnp.float32),
                     jax.ShapeDtypeStruct((N, 1, F), jnp.float32))
        out_specs = (y_spec,
                     pl.BlockSpec((None, 1, F), lambda i: (i, 0, 0)),
                     pl.BlockSpec((None, 1, F), lambda i: (i, 0, 0)))
    else:
        out_shape = jax.ShapeDtypeStruct((N, OH, OW, F), jnp.bfloat16)
        out_specs = y_spec

    return pl.pallas_call(
        kernel,
        out_shape=out_shape,
        grid=(N,),
        in_specs=in_specs,
        out_specs=out_specs,
        compiler_params=pltpu.CompilerParams(
            dimension_semantics=("parallel",)),
    )(*operands)


def dense_bn_sigmoid(a, w, scale, shift):
    """Final layer: deferred BN3 + LeakyReLU prologue, 4x4 'valid' conv (a plain
    matvec on the flattened 4x4 map) and Sigmoid, fused in one tiny kernel."""
    N, K = a.shape
    _, F = w.shape

    def kernel(sc_ref, sh_ref, a_ref, w_ref, o_ref):
        x = a_ref[...].astype(jnp.float32) * sc_ref[...] + sh_ref[...]
        x = jnp.where(x > 0, x, LEAKY_SLOPE * x).astype(jnp.bfloat16)
        acc = jnp.dot(x, w_ref[...], preferred_element_type=jnp.float32)
        o_ref[...] = pl.reciprocal(1.0 + jnp.exp(-acc), approx=True)

    return pl.pallas_call(
        kernel,
        out_shape=jax.ShapeDtypeStruct((N, F), jnp.float32),
        grid=(1,),
        in_specs=[pl.BlockSpec((1, K), lambda i: (0, 0)),
                  pl.BlockSpec((1, K), lambda i: (0, 0)),
                  pl.BlockSpec((N, K), lambda i: (0, 0)),
                  pl.BlockSpec((K, F), lambda i: (0, 0))],
        out_specs=pl.BlockSpec((N, F), lambda i: (0, 0)),
        compiler_params=pltpu.CompilerParams(
            dimension_semantics=("arbitrary",)),
    )(scale.reshape(1, K).astype(jnp.float32),
      shift.reshape(1, K).astype(jnp.float32),
      a.astype(jnp.bfloat16), w.astype(jnp.bfloat16))


# ---------------------------------------------------------------------------
# Discriminator forward
# ---------------------------------------------------------------------------
def discriminator_forward(x_nchw, params):
    """Equivalent of Discriminator.forward (training-mode BatchNorm, gamma=1, beta=0)."""
    w1, w2, w3, w4 = params
    wg1 = regroup_weight_s2(w1).astype(jnp.bfloat16)
    wg2 = regroup_weight_s2(w2).astype(jnp.bfloat16)
    wg3 = regroup_weight_s2(w3).astype(jnp.bfloat16)
    wm4 = w4.reshape(-1, w4.shape[-1]).astype(jnp.bfloat16)     # (4*4*C3, 1)

    x = jnp.transpose(x_nchw, (0, 2, 3, 1)).astype(jnp.bfloat16)  # NHWC bf16
    N = x.shape[0]

    # conv1 (4,2,1) + LeakyReLU (fused epilogue)
    y1 = conv4x4_s2(pad_and_s2d(x), wg1, epilogue="leaky")

    # conv2 (4,2,1): raw output + fused per-image BN statistics (parallel partials)
    y2, s2, q2 = conv4x4_s2(pad_and_s2d(y1), wg2, with_stats=True)
    _, OH2, OW2, _ = y2.shape
    mean2, scale2, shift2 = bn_scale_shift(s2, q2, N * OH2 * OW2)

    # conv3 (4,2,1): BN2+LeakyReLU applied as an in-kernel prologue; padding uses
    # mean2 so padded taps normalize to ~0 (== zero-padding of the normalized act).
    y3, s3, q3 = conv4x4_s2(pad_and_s2d(y2, pad_value=mean2), wg3,
                            with_stats=True,
                            scale=jnp.tile(scale2, 4), shift=jnp.tile(shift2, 4))
    _, OH3, OW3, C3 = y3.shape
    _, scale3, shift3 = bn_scale_shift(s3, q3, N * OH3 * OW3)

    # conv4 (4,1,0) + Sigmoid, BN3+LeakyReLU prologue fused; then .view(-1)
    a4 = y3.reshape(N, OH3 * OW3 * C3)
    out = dense_bn_sigmoid(a4, wm4,
                           scale=jnp.tile(scale3, OH3 * OW3),
                           shift=jnp.tile(shift3, OH3 * OW3))
    return out.reshape(-1)


# ---------------------------------------------------------------------------
# Pure-JAX reference (for verification)
# ---------------------------------------------------------------------------
def reference_forward(x_nchw, params):
    w1, w2, w3, w4 = params

    def conv(x, w, stride, pad):
        return lax.conv_general_dilated(
            x, w, (stride, stride), [(pad, pad), (pad, pad)],
            dimension_numbers=("NCHW", "HWIO", "NCHW"),
            precision=lax.Precision.HIGHEST)

    def leaky(x):
        return jnp.where(x > 0, x, LEAKY_SLOPE * x)

    def bn(x):
        mean = jnp.mean(x, axis=(0, 2, 3), keepdims=True)
        var = jnp.mean((x - mean) ** 2, axis=(0, 2, 3), keepdims=True)
        return (x - mean) / jnp.sqrt(var + BN_EPS)

    x = x_nchw.astype(jnp.float32)
    x = leaky(conv(x, w1, 2, 1))
    x = leaky(bn(conv(x, w2, 2, 1)))
    x = leaky(bn(conv(x, w3, 2, 1)))
    x = jax.nn.sigmoid(conv(x, w4, 1, 0))
    return x.reshape(-1)


# ---------------------------------------------------------------------------
# main
# ---------------------------------------------------------------------------
if __name__ == "__main__":
    # (k4 s2 p1) x3 + (k4 s1 p0) implies a 32x32 input.  num_channels=1, fm=8.
    num_channels, fm, batch, hw = 1, 8, 2, 32

    key = jax.random.PRNGKey(0)
    k_x, k1, k2, k3, k4 = jax.random.split(key, 5)

    # DCGAN-style normal(0, 0.02) init; weights stored HWIO (KH, KW, Cin, Cout).
    w1 = 0.02 * jax.random.normal(k1, (4, 4, num_channels, fm), jnp.float32)
    w2 = 0.02 * jax.random.normal(k2, (4, 4, fm, fm * 2), jnp.float32)
    w3 = 0.02 * jax.random.normal(k3, (4, 4, fm * 2, fm * 4), jnp.float32)
    w4 = 0.02 * jax.random.normal(k4, (4, 4, fm * 4, 1), jnp.float32)
    params = (w1, w2, w3, w4)

    x = jax.random.normal(k_x, (batch, num_channels, hw, hw), jnp.float32)  # NCHW

    fwd = jax.jit(discriminator_forward)
    out = jax.block_until_ready(fwd(x, params))
    ref = jax.block_until_ready(reference_forward(x, params))

    # bf16 MXU path vs f32 HIGHEST reference: looser but meaningful tolerance.
    np.testing.assert_allclose(np.asarray(out, dtype=np.float32),
                               np.asarray(ref, dtype=np.float32),
                               rtol=2e-2, atol=2e-2)
    assert out.shape == (batch,)

    print("KERNEL_OK")
</pallas_src>

<mosaic_0001>
module attributes {stable_mosaic.version = 11 : i64} {
  func.func @kernel(%arg0: i32, %arg1: memref<1x17x17x4xbf16, #tpu.memory_space<vmem>>, %arg2: memref<4x4x8xbf16, #tpu.memory_space<vmem>>, %arg3: memref<1x16x16x8xbf16, #tpu.memory_space<vmem>>) attributes {dimension_semantics = [#tpu.dimension_semantics<parallel>], iteration_bounds = array<i64: 2>, scalar_prefetch = 0 : i64, scratch_operands = 0 : i64, tpu.core_type = #tpu.core_type<tc>, window_params = [{transform_indices = @transform_0, window_bounds = array<i64: 1, 17, 17, 4>}, {pipeline_mode = #tpu.pipeline_mode<synchronous>, transform_indices = @transform_1, window_bounds = array<i64: 4, 4, 8>}, {transform_indices = @transform_2, window_bounds = array<i64: 1, 16, 16, 8>}]} {
    %c0_i32 = arith.constant 0 : i32
    %c16_i32 = arith.constant 16 : i32
    %0 = arith.addi %c0_i32, %c16_i32 : i32
    %c1_i32 = arith.constant 1 : i32
    scf.for %arg4 = %c0_i32 to %0 step %c1_i32  : i32 {
      %c1_i32_1 = arith.constant 1 : i32
      %1 = arith.muli %arg4, %c1_i32_1 : i32
      %c0_i32_2 = arith.constant 0 : i32
      %2 = arith.addi %c0_i32_2, %1 : i32
      %cst = arith.constant 0.000000e+00 : f32
      %3 = vector.broadcast %cst : f32 to vector<16x8xf32>
      %c0_i32_3 = arith.constant 0 : i32
      %4 = arith.addi %2, %c0_i32_3 : i32
      %c0 = arith.constant 0 : index
      %5 = arith.index_cast %4 : i32 to index
      %c0_4 = arith.constant 0 : index
      %c0_5 = arith.constant 0 : index
      %6 = vector.load %arg1[%c0, %5, %c0_4, %c0_5] : memref<1x17x17x4xbf16, #tpu.memory_space<vmem>>, vector<1x1x16x4xbf16>
      %7 = vector.shape_cast %6 : vector<1x1x16x4xbf16> to vector<16x4xbf16>
      %c0_6 = arith.constant 0 : index
      %c0_7 = arith.constant 0 : index
      %c0_8 = arith.constant 0 : index
      %8 = vector.load %arg2[%c0_6, %c0_7, %c0_8] : memref<4x4x8xbf16, #tpu.memory_space<vmem>>, vector<1x4x8xbf16>
      %9 = vector.shape_cast %8 : vector<1x4x8xbf16> to vector<4x8xbf16>
      %cst_9 = arith.constant dense<0.000000e+00> : vector<16x8xf32>
      %10 = tpu.matmul %7, %9, %cst_9 {dimension_numbers = #tpu.dot_dimension_numbers<[1], [0], [0], [1], [0, 0, 1, 1], [], []>} : vector<16x4xbf16>, vector<4x8xbf16>, vector<16x8xf32> -> vector<16x8xf32>
      %11 = arith.addf %3, %10 : vector<16x8xf32>
      %c0_i32_10 = arith.constant 0 : i32
      %12 = arith.addi %2, %c0_i32_10 : i32
      %c0_11 = arith.constant 0 : index
      %13 = arith.index_cast %12 : i32 to index
      %c1 = arith.constant 1 : index
      %c0_12 = arith.constant 0 : index
      %14 = vector.load %arg1[%c0_11, %13, %c1, %c0_12] : memref<1x17x17x4xbf16, #tpu.memory_space<vmem>>, vector<1x1x16x4xbf16>
      %15 = vector.shape_cast %14 : vector<1x1x16x4xbf16> to vector<16x4xbf16>
      %c1_13 = arith.constant 1 : index
      %c0_14 = arith.constant 0 : index
      %c0_15 = arith.constant 0 : index
      %16 = vector.load %arg2[%c1_13, %c0_14, %c0_15] : memref<4x4x8xbf16, #tpu.memory_space<vmem>>, vector<1x4x8xbf16>
      %17 = vector.shape_cast %16 : vector<1x4x8xbf16> to vector<4x8xbf16>
      %cst_16 = arith.constant dense<0.000000e+00> : vector<16x8xf32>
      %18 = tpu.matmul %15, %17, %cst_16 {dimension_numbers = #tpu.dot_dimension_numbers<[1], [0], [0], [1], [0, 0, 1, 1], [], []>} : vector<16x4xbf16>, vector<4x8xbf16>, vector<16x8xf32> -> vector<16x8xf32>
      %19 = arith.addf %11, %18 : vector<16x8xf32>
      %c1_i32_17 = arith.constant 1 : i32
      %20 = arith.addi %2, %c1_i32_17 : i32
      %c0_18 = arith.constant 0 : index
      %21 = arith.index_cast %20 : i32 to index
      %c0_19 = arith.constant 0 : index
      %c0_20 = arith.constant 0 : index
      %22 = vector.load %arg1[%c0_18, %21, %c0_19, %c0_20] : memref<1x17x17x4xbf16, #tpu.memory_space<vmem>>, vector<1x1x16x4xbf16>
      %23 = vector.shape_cast %22 : vector<1x1x16x4xbf16> to vector<16x4xbf16>
      %c2 = arith.constant 2 : index
      %c0_21 = arith.constant 0 : index
      %c0_22 = arith.constant 0 : index
      %24 = vector.load %arg2[%c2, %c0_21, %c0_22] : memref<4x4x8xbf16, #tpu.memory_space<vmem>>, vector<1x4x8xbf16>
      %25 = vector.shape_cast %24 : vector<1x4x8xbf16> to vector<4x8xbf16>
      %cst_23 = arith.constant dense<0.000000e+00> : vector<16x8xf32>
      %26 = tpu.matmul %23, %25, %cst_23 {dimension_numbers = #tpu.dot_dimension_numbers<[1], [0], [0], [1], [0, 0, 1, 1], [], []>} : vector<16x4xbf16>, vector<4x8xbf16>, vector<16x8xf32> -> vector<16x8xf32>
      %27 = arith.addf %19, %26 : vector<16x8xf32>
      %c1_i32_24 = arith.constant 1 : i32
      %28 = arith.addi %2, %c1_i32_24 : i32
      %c0_25 = arith.constant 0 : index
      %29 = arith.index_cast %28 : i32 to index
      %c1_26 = arith.constant 1 : index
      %c0_27 = arith.constant 0 : index
      %30 = vector.load %arg1[%c0_25, %29, %c1_26, %c0_27] : memref<1x17x17x4xbf16, #tpu.memory_space<vmem>>, vector<1x1x16x4xbf16>
      %31 = vector.shape_cast %30 : vector<1x1x16x4xbf16> to vector<16x4xbf16>
      %c3 = arith.constant 3 : index
      %c0_28 = arith.constant 0 : index
      %c0_29 = arith.constant 0 : index
      %32 = vector.load %arg2[%c3, %c0_28, %c0_29] : memref<4x4x8xbf16, #tpu.memory_space<vmem>>, vector<1x4x8xbf16>
      %33 = vector.shape_cast %32 : vector<1x4x8xbf16> to vector<4x8xbf16>
      %cst_30 = arith.constant dense<0.000000e+00> : vector<16x8xf32>
      %34 = tpu.matmul %31, %33, %cst_30 {dimension_numbers = #tpu.dot_dimension_numbers<[1], [0], [0], [1], [0, 0, 1, 1], [], []>} : vector<16x4xbf16>, vector<4x8xbf16>, vector<16x8xf32> -> vector<16x8xf32>
      %35 = arith.addf %27, %34 : vector<16x8xf32>
      %cst_31 = arith.constant 0.000000e+00 : f32
      %36 = vector.broadcast %cst_31 : f32 to vector<16x8xf32>
      %37 = arith.cmpf ogt, %35, %36 : vector<16x8xf32>
      %cst_32 = arith.constant 2.000000e-01 : f32
      %38 = vector.broadcast %cst_32 : f32 to vector<16x8xf32>
      %39 = arith.mulf %38, %35 : vector<16x8xf32>
      %40 = arith.select %37, %35, %39 : vector<16x8xi1>, vector<16x8xf32>
      %41 = arith.truncf %40 : vector<16x8xf32> to vector<16x8xbf16>
      %c0_33 = arith.constant 0 : index
      %42 = arith.index_cast %2 : i32 to index
      %c0_34 = arith.constant 0 : index
      %c0_35 = arith.constant 0 : index
      %43 = vector.load %arg3[%c0_33, %42, %c0_34, %c0_35] : memref<1x16x16x8xbf16, #tpu.memory_space<vmem>>, vector<1x1x16x8xbf16>
      %44 = vector.shape_cast %43 : vector<1x1x16x8xbf16> to vector<16x8xbf16>
      %45 = vector.shape_cast %41 : vector<16x8xbf16> to vector<1x1x16x8xbf16>
      tpu.vector_store %arg3[%c0_33, %42, %c0_34, %c0_35], %45 {strides = array<i32>} : memref<1x16x16x8xbf16, #tpu.memory_space<vmem>>, vector<1x1x16x8xbf16>,
    }
    %c16_i32_0 = arith.constant 16 : i32
    return
  }
  func.func @transform_0(%arg0: i32) -> (i32, i32, i32, i32) {
    %c0_i32 = arith.constant 0 : i32
    %c0_i32_0 = arith.constant 0 : i32
    %c0_i32_1 = arith.constant 0 : i32
    %c0_i32_2 = arith.constant 0 : i32
    return %arg0, %c0_i32, %c0_i32_0, %c0_i32_1 : i32, i32, i32, i32
  }
  func.func @transform_1(%arg0: i32) -> (i32, i32, i32) {
    %c0_i32 = arith.constant 0 : i32
    %c0_i32_0 = arith.constant 0 : i32
    %c0_i32_1 = arith.constant 0 : i32
    %c0_i32_2 = arith.constant 0 : i32
    return %c0_i32, %c0_i32_0, %c0_i32_1 : i32, i32, i32
  }
  func.func @transform_2(%arg0: i32) -> (i32, i32, i32, i32) {
    %c0_i32 = arith.constant 0 : i32
    %c0_i32_0 = arith.constant 0 : i32
    %c0_i32_1 = arith.constant 0 : i32
    %c0_i32_2 = arith.constant 0 : i32
    return %arg0, %c0_i32, %c0_i32_0, %c0_i32_1 : i32, i32, i32, i32
  }
}

module attributes {stable_mosaic.version = 11 : i64} {
  func.func @kernel(%arg0: i32, %arg1: memref<1x9x9x32xbf16, #tpu.memory_space<vmem>>, %arg2: memref<4x32x16xbf16, #tpu.memory_space<vmem>>, %arg3: memref<1x8x8x16xbf16, #tpu.memory_space<vmem>>, %arg4: memref<1x1x16xf32, #tpu.memory_space<vmem>>, %arg5: memref<1x1x16xf32, #tpu.memory_space<vmem>>) attributes {dimension_semantics = [#tpu.dimension_semantics<parallel>], iteration_bounds = array<i64: 2>, scalar_prefetch = 0 : i64, scratch_operands = 0 : i64, tpu.core_type = #tpu.core_type<tc>, window_params = [{transform_indices = @transform_0, window_bounds = array<i64: 1, 9, 9, 32>}, {pipeline_mode = #tpu.pipeline_mode<synchronous>, transform_indices = @transform_1, window_bounds = array<i64: 4, 32, 16>}, {transform_indices = @transform_2, window_bounds = array<i64: 1, 8, 8, 16>}, {transform_indices = @transform_3, window_bounds = array<i64: 1, 1, 16>}, {transform_indices = @transform_4, window_bounds = array<i64: 1, 1, 16>}]} {
    %cst = arith.constant 0.000000e+00 : f32
    %0 = vector.broadcast %cst : f32 to vector<1x16xf32>
    %c0 = arith.constant 0 : index
    %c0_0 = arith.constant 0 : index
    %c0_1 = arith.constant 0 : index
    %1 = vector.load %arg4[%c0, %c0_0, %c0_1] : memref<1x1x16xf32, #tpu.memory_space<vmem>>, vector<1x1x16xf32>
    %2 = vector.shape_cast %1 : vector<1x1x16xf32> to vector<1x16xf32>
    %3 = vector.shape_cast %0 : vector<1x16xf32> to vector<1x1x16xf32>
    tpu.vector_store %arg4[%c0, %c0_0, %c0_1], %3 {strides = array<i32>} : memref<1x1x16xf32, #tpu.memory_space<vmem>>, vector<1x1x16xf32>,
    %cst_2 = arith.constant 0.000000e+00 : f32
    %4 = vector.broadcast %cst_2 : f32 to vector<1x16xf32>
    %c0_3 = arith.constant 0 : index
    %c0_4 = arith.constant 0 : index
    %c0_5 = arith.constant 0 : index
    %5 = vector.load %arg5[%c0_3, %c0_4, %c0_5] : memref<1x1x16xf32, #tpu.memory_space<vmem>>, vector<1x1x16xf32>
    %6 = vector.shape_cast %5 : vector<1x1x16xf32> to vector<1x16xf32>
    %7 = vector.shape_cast %4 : vector<1x16xf32> to vector<1x1x16xf32>
    tpu.vector_store %arg5[%c0_3, %c0_4, %c0_5], %7 {strides = array<i32>} : memref<1x1x16xf32, #tpu.memory_space<vmem>>, vector<1x1x16xf32>,
    %c0_i32 = arith.constant 0 : i32
    %c8_i32 = arith.constant 8 : i32
    %8 = arith.addi %c0_i32, %c8_i32 : i32
    %c1_i32 = arith.constant 1 : i32
    scf.for %arg6 = %c0_i32 to %8 step %c1_i32  : i32 {
      %c1_i32_7 = arith.constant 1 : i32
      %9 = arith.muli %arg6, %c1_i32_7 : i32
      %c0_i32_8 = arith.constant 0 : i32
      %10 = arith.addi %c0_i32_8, %9 : i32
      %cst_9 = arith.constant 0.000000e+00 : f32
      %11 = vector.broadcast %cst_9 : f32 to vector<8x16xf32>
      %c0_i32_10 = arith.constant 0 : i32
      %12 = arith.addi %10, %c0_i32_10 : i32
      %c0_11 = arith.constant 0 : index
      %13 = arith.index_cast %12 : i32 to index
      %c0_12 = arith.constant 0 : index
      %c0_13 = arith.constant 0 : index
      %14 = vector.load %arg1[%c0_11, %13, %c0_12, %c0_13] : memref<1x9x9x32xbf16, #tpu.memory_space<vmem>>, vector<1x1x8x32xbf16>
      %15 = vector.shape_cast %14 : vector<1x1x8x32xbf16> to vector<8x32xbf16>
      %c0_14 = arith.constant 0 : index
      %c0_15 = arith.constant 0 : index
      %c0_16 = arith.constant 0 : index
      %16 = vector.load %arg2[%c0_14, %c0_15, %c0_16] : memref<4x32x16xbf16, #tpu.memory_space<vmem>>, vector<1x32x16xbf16>
      %17 = vector.shape_cast %16 : vector<1x32x16xbf16> to vector<32x16xbf16>
      %cst_17 = arith.constant dense<0.000000e+00> : vector<8x16xf32>
      %18 = tpu.matmul %15, %17, %cst_17 {dimension_numbers = #tpu.dot_dimension_numbers<[1], [0], [0], [1], [0, 0, 1, 1], [], []>} : vector<8x32xbf16>, vector<32x16xbf16>, vector<8x16xf32> -> vector<8x16xf32>
      %19 = arith.addf %11, %18 : vector<8x16xf32>
      %c0_i32_18 = arith.constant 0 : i32
      %20 = arith.addi %10, %c0_i32_18 : i32
      %c0_19 = arith.constant 0 : index
      %21 = arith.index_cast %20 : i32 to index
      %c1 = arith.constant 1 : index
      %c0_20 = arith.constant 0 : index
      %22 = vector.load %arg1[%c0_19, %21, %c1, %c0_20] : memref<1x9x9x32xbf16, #tpu.memory_space<vmem>>, vector<1x1x8x32xbf16>
      %23 = vector.shape_cast %22 : vector<1x1x8x32xbf16> to vector<8x32xbf16>
      %c1_21 = arith.constant 1 : index
      %c0_22 = arith.constant 0 : index
      %c0_23 = arith.constant 0 : index
      %24 = vector.load %arg2[%c1_21, %c0_22, %c0_23] : memref<4x32x16xbf16, #tpu.memory_space<vmem>>, vector<1x32x16xbf16>
      %25 = vector.shape_cast %24 : vector<1x32x16xbf16> to vector<32x16xbf16>
      %cst_24 = arith.constant dense<0.000000e+00> : vector<8x16xf32>
      %26 = tpu.matmul %23, %25, %cst_24 {dimension_numbers = #tpu.dot_dimension_numbers<[1], [0], [0], [1], [0, 0, 1, 1], [], []>} : vector<8x32xbf16>, vector<32x16xbf16>, vector<8x16xf32> -> vector<8x16xf32>
      %27 = arith.addf %19, %26 : vector<8x16xf32>
      %c1_i32_25 = arith.constant 1 : i32
      %28 = arith.addi %10, %c1_i32_25 : i32
      %c0_26 = arith.constant 0 : index
      %29 = arith.index_cast %28 : i32 to index
      %c0_27 = arith.constant 0 : index
      %c0_28 = arith.constant 0 : index
      %30 = vector.load %arg1[%c0_26, %29, %c0_27, %c0_28] : memref<1x9x9x32xbf16, #tpu.memory_space<vmem>>, vector<1x1x8x32xbf16>
      %31 = vector.shape_cast %30 : vector<1x1x8x32xbf16> to vector<8x32xbf16>
      %c2 = arith.constant 2 : index
      %c0_29 = arith.constant 0 : index
      %c0_30 = arith.constant 0 : index
      %32 = vector.load %arg2[%c2, %c0_29, %c0_30] : memref<4x32x16xbf16, #tpu.memory_space<vmem>>, vector<1x32x16xbf16>
      %33 = vector.shape_cast %32 : vector<1x32x16xbf16> to vector<32x16xbf16>
      %cst_31 = arith.constant dense<0.000000e+00> : vector<8x16xf32>
      %34 = tpu.matmul %31, %33, %cst_31 {dimension_numbers = #tpu.dot_dimension_numbers<[1], [0], [0], [1], [0, 0, 1, 1], [], []>} : vector<8x32xbf16>, vector<32x16xbf16>, vector<8x16xf32> -> vector<8x16xf32>
      %35 = arith.addf %27, %34 : vector<8x16xf32>
      %c1_i32_32 = arith.constant 1 : i32
      %36 = arith.addi %10, %c1_i32_32 : i32
      %c0_33 = arith.constant 0 : index
      %37 = arith.index_cast %36 : i32 to index
      %c1_34 = arith.constant 1 : index
      %c0_35 = arith.constant 0 : index
      %38 = vector.load %arg1[%c0_33, %37, %c1_34, %c0_35] : memref<1x9x9x32xbf16, #tpu.memory_space<vmem>>, vector<1x1x8x32xbf16>
      %39 = vector.shape_cast %38 : vector<1x1x8x32xbf16> to vector<8x32xbf16>
      %c3 = arith.constant 3 : index
      %c0_36 = arith.constant 0 : index
      %c0_37 = arith.constant 0 : index
      %40 = vector.load %arg2[%c3, %c0_36, %c0_37] : memref<4x32x16xbf16, #tpu.memory_space<vmem>>, vector<1x32x16xbf16>
      %41 = vector.shape_cast %40 : vector<1x32x16xbf16> to vector<32x16xbf16>
      %cst_38 = arith.constant dense<0.000000e+00> : vector<8x16xf32>
      %42 = tpu.matmul %39, %41, %cst_38 {dimension_numbers = #tpu.dot_dimension_numbers<[1], [0], [0], [1], [0, 0, 1, 1], [], []>} : vector<8x32xbf16>, vector<32x16xbf16>, vector<8x16xf32> -> vector<8x16xf32>
      %43 = arith.addf %35, %42 : vector<8x16xf32>
      %44 = arith.truncf %43 : vector<8x16xf32> to vector<8x16xbf16>
      %c0_39 = arith.constant 0 : index
      %45 = arith.index_cast %10 : i32 to index
      %c0_40 = arith.constant 0 : index
      %c0_41 = arith.constant 0 : index
      %46 = vector.load %arg3[%c0_39, %45, %c0_40, %c0_41] : memref<1x8x8x16xbf16, #tpu.memory_space<vmem>>, vector<1x1x8x16xbf16>
      %47 = vector.shape_cast %46 : vector<1x1x8x16xbf16> to vector<8x16xbf16>
      %48 = vector.shape_cast %44 : vector<8x16xbf16> to vector<1x1x8x16xbf16>
      tpu.vector_store %arg3[%c0_39, %45, %c0_40, %c0_41], %48 {strides = array<i32>} : memref<1x8x8x16xbf16, #tpu.memory_space<vmem>>, vector<1x1x8x16xbf16>,
      %c0_42 = arith.constant 0 : index
      %c0_43 = arith.constant 0 : index
      %c0_44 = arith.constant 0 : index
      %49 = vector.load %arg4[%c0_42, %c0_43, %c0_44] : memref<1x1x16xf32, #tpu.memory_space<vmem>>, vector<1x1x16xf32>
      %50 = vector.shape_cast %49 : vector<1x1x16xf32> to vector<1x16xf32>
      %cst_45 = arith.constant dense<0.000000e+00> : vector<16xf32>
      %51 = vector.multi_reduction <add>, %43, %cst_45 [0] : vector<8x16xf32> to vector<16xf32>
      %52 = vector.shape_cast %51 : vector<16xf32> to vector<1x16xf32>
      %53 = arith.addf %50, %52 : vector<1x16xf32>
      %c0_46 = arith.constant 0 : index
      %c0_47 = arith.constant 0 : index
      %c0_48 = arith.constant 0 : index
      %54 = vector.load %arg4[%c0_46, %c0_47, %c0_48] : memref<1x1x16xf32, #tpu.memory_space<vmem>>, vector<1x1x16xf32>
      %55 = vector.shape_cast %54 : vector<1x1x16xf32> to vector<1x16xf32>
      %56 = vector.shape_cast %53 : vector<1x16xf32> to vector<1x1x16xf32>
      tpu.vector_store %arg4[%c0_46, %c0_47, %c0_48], %56 {strides = array<i32>} : memref<1x1x16xf32, #tpu.memory_space<vmem>>, vector<1x1x16xf32>,
      %c0_49 = arith.constant 0 : index
      %c0_50 = arith.constant 0 : index
      %c0_51 = arith.constant 0 : index
      %57 = vector.load %arg5[%c0_49, %c0_50, %c0_51] : memref<1x1x16xf32, #tpu.memory_space<vmem>>, vector<1x1x16xf32>
      %58 = vector.shape_cast %57 : vector<1x1x16xf32> to vector<1x16xf32>
      %59 = arith.mulf %43, %43 : vector<8x16xf32>
      %cst_52 = arith.constant dense<0.000000e+00> : vector<16xf32>
      %60 = vector.multi_reduction <add>, %59, %cst_52 [0] : vector<8x16xf32> to vector<16xf32>
      %61 = vector.shape_cast %60 : vector<16xf32> to vector<1x16xf32>
      %62 = arith.addf %58, %61 : vector<1x16xf32>
      %c0_53 = arith.constant 0 : index
      %c0_54 = arith.constant 0 : index
      %c0_55 = arith.constant 0 : index
      %63 = vector.load %arg5[%c0_53, %c0_54, %c0_55] : memref<1x1x16xf32, #tpu.memory_space<vmem>>, vector<1x1x16xf32>
      %64 = vector.shape_cast %63 : vector<1x1x16xf32> to vector<1x16xf32>
      %65 = vector.shape_cast %62 : vector<1x16xf32> to vector<1x1x16xf32>
      tpu.vector_store %arg5[%c0_53, %c0_54, %c0_55], %65 {strides = array<i32>} : memref<1x1x16xf32, #tpu.memory_space<vmem>>, vector<1x1x16xf32>,
    }
    %c8_i32_6 = arith.constant 8 : i32
    return
  }
  func.func @transform_0(%arg0: i32) -> (i32, i32, i32, i32) {
    %c0_i32 = arith.constant 0 : i32
    %c0_i32_0 = arith.constant 0 : i32
    %c0_i32_1 = arith.constant 0 : i32
    %c0_i32_2 = arith.constant 0 : i32
    return %arg0, %c0_i32, %c0_i32_0, %c0_i32_1 : i32, i32, i32, i32
  }
  func.func @transform_1(%arg0: i32) -> (i32, i32, i32) {
    %c0_i32 = arith.constant 0 : i32
    %c0_i32_0 = arith.constant 0 : i32
    %c0_i32_1 = arith.constant 0 : i32
    %c0_i32_2 = arith.constant 0 : i32
    return %c0_i32, %c0_i32_0, %c0_i32_1 : i32, i32, i32
  }
  func.func @transform_2(%arg0: i32) -> (i32, i32, i32, i32) {
    %c0_i32 = arith.constant 0 : i32
    %c0_i32_0 = arith.constant 0 : i32
    %c0_i32_1 = arith.constant 0 : i32
    %c0_i32_2 = arith.constant 0 : i32
    return %arg0, %c0_i32, %c0_i32_0, %c0_i32_1 : i32, i32, i32, i32
  }
  func.func @transform_3(%arg0: i32) -> (i32, i32, i32) {
    %c0_i32 = arith.constant 0 : i32
    %c0_i32_0 = arith.constant 0 : i32
    %c0_i32_1 = arith.constant 0 : i32
    return %arg0, %c0_i32, %c0_i32_0 : i32, i32, i32
  }
  func.func @transform_4(%arg0: i32) -> (i32, i32, i32) {
    %c0_i32 = arith.constant 0 : i32
    %c0_i32_0 = arith.constant 0 : i32
    %c0_i32_1 = arith.constant 0 : i32
    return %arg0, %c0_i32, %c0_i32_0 : i32, i32, i32
  }
}

module attributes {stable_mosaic.version = 11 : i64} {
  func.func @kernel(%arg0: i32, %arg1: memref<1x512xf32, #tpu.memory_space<vmem>>, %arg2: memref<1x512xf32, #tpu.memory_space<vmem>>, %arg3: memref<2x512xbf16, #tpu.memory_space<vmem>>, %arg4: memref<512x1xbf16, #tpu.memory_space<vmem>>, %arg5: memref<2x1xf32, #tpu.memory_space<vmem>>) attributes {dimension_semantics = [#tpu.dimension_semantics<arbitrary>], iteration_bounds = array<i64: 1>, scalar_prefetch = 0 : i64, scratch_operands = 0 : i64, tpu.core_type = #tpu.core_type<tc>, window_params = [{pipeline_mode = #tpu.pipeline_mode<synchronous>, transform_indices = @transform_0, window_bounds = array<i64: 1, 512>}, {pipeline_mode = #tpu.pipeline_mode<synchronous>, transform_indices = @transform_1, window_bounds = array<i64: 1, 512>}, {pipeline_mode = #tpu.pipeline_mode<synchronous>, transform_indices = @transform_2, window_bounds = array<i64: 2, 512>}, {pipeline_mode = #tpu.pipeline_mode<synchronous>, transform_indices = @transform_3, window_bounds = array<i64: 512, 1>}, {pipeline_mode = #tpu.pipeline_mode<synchronous>, transform_indices = @transform_4, window_bounds = array<i64: 2, 1>}]} {
    %c0 = arith.constant 0 : index
    %c0_0 = arith.constant 0 : index
    %0 = vector.load %arg3[%c0, %c0_0] : memref<2x512xbf16, #tpu.memory_space<vmem>>, vector<2x512xbf16>
    %1 = arith.extf %0 : vector<2x512xbf16> to vector<2x512xf32>
    %c0_1 = arith.constant 0 : index
    %c0_2 = arith.constant 0 : index
    %2 = vector.load %arg1[%c0_1, %c0_2] : memref<1x512xf32, #tpu.memory_space<vmem>>, vector<1x512xf32>
    %3 = vector.broadcast %2 : vector<1x512xf32> to vector<2x512xf32>
    %4 = arith.mulf %1, %3 : vector<2x512xf32>
    %c0_3 = arith.constant 0 : index
    %c0_4 = arith.constant 0 : index
    %5 = vector.load %arg2[%c0_3, %c0_4] : memref<1x512xf32, #tpu.memory_space<vmem>>, vector<1x512xf32>
    %6 = vector.broadcast %5 : vector<1x512xf32> to vector<2x512xf32>
    %7 = arith.addf %4, %6 : vector<2x512xf32>
    %cst = arith.constant 0.000000e+00 : f32
    %8 = vector.broadcast %cst : f32 to vector<2x512xf32>
    %9 = arith.cmpf ogt, %7, %8 : vector<2x512xf32>
    %cst_5 = arith.constant 2.000000e-01 : f32
    %10 = vector.broadcast %cst_5 : f32 to vector<2x512xf32>
    %11 = arith.mulf %10, %7 : vector<2x512xf32>
    %12 = arith.select %9, %7, %11 : vector<2x512xi1>, vector<2x512xf32>
    %13 = arith.truncf %12 : vector<2x512xf32> to vector<2x512xbf16>
    %c0_6 = arith.constant 0 : index
    %c0_7 = arith.constant 0 : index
    %14 = vector.load %arg4[%c0_6, %c0_7] : memref<512x1xbf16, #tpu.memory_space<vmem>>, vector<512x1xbf16>
    %cst_8 = arith.constant dense<0.000000e+00> : vector<2x1xf32>
    %15 = tpu.matmul %13, %14, %cst_8 {dimension_numbers = #tpu.dot_dimension_numbers<[1], [0], [0], [1], [0, 0, 1, 1], [], []>} : vector<2x512xbf16>, vector<512x1xbf16>, vector<2x1xf32> -> vector<2x1xf32>
    %cst_9 = arith.constant 0.000000e+00 : f32
    %16 = vector.broadcast %cst_9 : f32 to vector<2x1xf32>
    %17 = arith.subf %16, %15 : vector<2x1xf32>
    %18 = math.exp %17 : vector<2x1xf32>
    %cst_10 = arith.constant 1.000000e+00 : f32
    %19 = vector.broadcast %cst_10 : f32 to vector<2x1xf32>
    %20 = arith.addf %19, %18 : vector<2x1xf32>
    %21 = tpu.reciprocal %20 {approx = true} : vector<2x1xf32> -> vector<2x1xf32>
    %c0_11 = arith.constant 0 : index
    %c0_12 = arith.constant 0 : index
    %22 = vector.load %arg5[%c0_11, %c0_12] : memref<2x1xf32, #tpu.memory_space<vmem>>, vector<2x1xf32>
    tpu.vector_store %arg5[%c0_11, %c0_12], %21 {strides = array<i32>} : memref<2x1xf32, #tpu.memory_space<vmem>>, vector<2x1xf32>,
    return
  }
  func.func @transform_0(%arg0: i32) -> (i32, i32) {
    %c0_i32 = arith.constant 0 : i32
    %c0_i32_0 = arith.constant 0 : i32
    %c0_i32_1 = arith.constant 0 : i32
    return %c0_i32, %c0_i32_0 : i32, i32
  }
  func.func @transform_1(%arg0: i32) -> (i32, i32) {
    %c0_i32 = arith.constant 0 : i32
    %c0_i32_0 = arith.constant 0 : i32
    %c0_i32_1 = arith.constant 0 : i32
    return %c0_i32, %c0_i32_0 : i32, i32
  }
  func.func @transform_2(%arg0: i32) -> (i32, i32) {
    %c0_i32 = arith.constant 0 : i32
    %c0_i32_0 = arith.constant 0 : i32
    %c0_i32_1 = arith.constant 0 : i32
    return %c0_i32, %c0_i32_0 : i32, i32
  }
  func.func @transform_3(%arg0: i32) -> (i32, i32) {
    %c0_i32 = arith.constant 0 : i32
    %c0_i32_0 = arith.constant 0 : i32
    %c0_i32_1 = arith.constant 0 : i32
    return %c0_i32, %c0_i32_0 : i32, i32
  }
  func.func @transform_4(%arg0: i32) -> (i32, i32) {
    %c0_i32 = arith.constant 0 : i32
    %c0_i32_0 = arith.constant 0 : i32
    %c0_i32_1 = arith.constant 0 : i32
    return %c0_i32, %c0_i32_0 : i32, i32
  }
}

module attributes {stable_mosaic.version = 11 : i64} {
  func.func @kernel(%arg0: i32, %arg1: memref<1x64xf32, #tpu.memory_space<vmem>>, %arg2: memref<1x64xf32, #tpu.memory_space<vmem>>, %arg3: memref<1x5x5x64xbf16, #tpu.memory_space<vmem>>, %arg4: memref<4x64x32xbf16, #tpu.memory_space<vmem>>, %arg5: memref<1x4x4x32xbf16, #tpu.memory_space<vmem>>, %arg6: memref<1x1x32xf32, #tpu.memory_space<vmem>>, %arg7: memref<1x1x32xf32, #tpu.memory_space<vmem>>) attributes {dimension_semantics = [#tpu.dimension_semantics<parallel>], iteration_bounds = array<i64: 2>, scalar_prefetch = 0 : i64, scratch_operands = 0 : i64, tpu.core_type = #tpu.core_type<tc>, window_params = [{pipeline_mode = #tpu.pipeline_mode<synchronous>, transform_indices = @transform_0, window_bounds = array<i64: 1, 64>}, {pipeline_mode = #tpu.pipeline_mode<synchronous>, transform_indices = @transform_1, window_bounds = array<i64: 1, 64>}, {transform_indices = @transform_2, window_bounds = array<i64: 1, 5, 5, 64>}, {pipeline_mode = #tpu.pipeline_mode<synchronous>, transform_indices = @transform_3, window_bounds = array<i64: 4, 64, 32>}, {transform_indices = @transform_4, window_bounds = array<i64: 1, 4, 4, 32>}, {transform_indices = @transform_5, window_bounds = array<i64: 1, 1, 32>}, {transform_indices = @transform_6, window_bounds = array<i64: 1, 1, 32>}]} {
    %cst = arith.constant 0.000000e+00 : f32
    %0 = vector.broadcast %cst : f32 to vector<1x32xf32>
    %c0 = arith.constant 0 : index
    %c0_0 = arith.constant 0 : index
    %c0_1 = arith.constant 0 : index
    %1 = vector.load %arg6[%c0, %c0_0, %c0_1] : memref<1x1x32xf32, #tpu.memory_space<vmem>>, vector<1x1x32xf32>
    %2 = vector.shape_cast %1 : vector<1x1x32xf32> to vector<1x32xf32>
    %3 = vector.shape_cast %0 : vector<1x32xf32> to vector<1x1x32xf32>
    tpu.vector_store %arg6[%c0, %c0_0, %c0_1], %3 {strides = array<i32>} : memref<1x1x32xf32, #tpu.memory_space<vmem>>, vector<1x1x32xf32>,
    %cst_2 = arith.constant 0.000000e+00 : f32
    %4 = vector.broadcast %cst_2 : f32 to vector<1x32xf32>
    %c0_3 = arith.constant 0 : index
    %c0_4 = arith.constant 0 : index
    %c0_5 = arith.constant 0 : index
    %5 = vector.load %arg7[%c0_3, %c0_4, %c0_5] : memref<1x1x32xf32, #tpu.memory_space<vmem>>, vector<1x1x32xf32>
    %6 = vector.shape_cast %5 : vector<1x1x32xf32> to vector<1x32xf32>
    %7 = vector.shape_cast %4 : vector<1x32xf32> to vector<1x1x32xf32>
    tpu.vector_store %arg7[%c0_3, %c0_4, %c0_5], %7 {strides = array<i32>} : memref<1x1x32xf32, #tpu.memory_space<vmem>>, vector<1x1x32xf32>,
    %c0_i32 = arith.constant 0 : i32
    %c4_i32 = arith.constant 4 : i32
    %8 = arith.addi %c0_i32, %c4_i32 : i32
    %c1_i32 = arith.constant 1 : i32
    scf.for %arg8 = %c0_i32 to %8 step %c1_i32  : i32 {
      %c1_i32_7 = arith.constant 1 : i32
      %9 = arith.muli %arg8, %c1_i32_7 : i32
      %c0_i32_8 = arith.constant 0 : i32
      %10 = arith.addi %c0_i32_8, %9 : i32
      %cst_9 = arith.constant 0.000000e+00 : f32
      %11 = vector.broadcast %cst_9 : f32 to vector<4x32xf32>
      %c0_i32_10 = arith.constant 0 : i32
      %12 = arith.addi %10, %c0_i32_10 : i32
      %c0_11 = arith.constant 0 : index
      %13 = arith.index_cast %12 : i32 to index
      %c0_12 = arith.constant 0 : index
      %c0_13 = arith.constant 0 : index
      %14 = vector.load %arg3[%c0_11, %13, %c0_12, %c0_13] : memref<1x5x5x64xbf16, #tpu.memory_space<vmem>>, vector<1x1x4x64xbf16>
      %15 = vector.shape_cast %14 : vector<1x1x4x64xbf16> to vector<4x64xbf16>
      %16 = arith.extf %15 : vector<4x64xbf16> to vector<4x64xf32>
      %c0_14 = arith.constant 0 : index
      %c0_15 = arith.constant 0 : index
      %17 = vector.load %arg1[%c0_14, %c0_15] : memref<1x64xf32, #tpu.memory_space<vmem>>, vector<1x64xf32>
      %18 = vector.broadcast %17 : vector<1x64xf32> to vector<4x64xf32>
      %19 = arith.mulf %16, %18 : vector<4x64xf32>
      %c0_16 = arith.constant 0 : index
      %c0_17 = arith.constant 0 : index
      %20 = vector.load %arg2[%c0_16, %c0_17] : memref<1x64xf32, #tpu.memory_space<vmem>>, vector<1x64xf32>
      %21 = vector.broadcast %20 : vector<1x64xf32> to vector<4x64xf32>
      %22 = arith.addf %19, %21 : vector<4x64xf32>
      %cst_18 = arith.constant 0.000000e+00 : f32
      %23 = vector.broadcast %cst_18 : f32 to vector<4x64xf32>
      %24 = arith.cmpf ogt, %22, %23 : vector<4x64xf32>
      %cst_19 = arith.constant 2.000000e-01 : f32
      %25 = vector.broadcast %cst_19 : f32 to vector<4x64xf32>
      %26 = arith.mulf %25, %22 : vector<4x64xf32>
      %27 = arith.select %24, %22, %26 : vector<4x64xi1>, vector<4x64xf32>
      %28 = arith.truncf %27 : vector<4x64xf32> to vector<4x64xbf16>
      %c0_20 = arith.constant 0 : index
      %c0_21 = arith.constant 0 : index
      %c0_22 = arith.constant 0 : index
      %29 = vector.load %arg4[%c0_20, %c0_21, %c0_22] : memref<4x64x32xbf16, #tpu.memory_space<vmem>>, vector<1x64x32xbf16>
      %30 = vector.shape_cast %29 : vector<1x64x32xbf16> to vector<64x32xbf16>
      %cst_23 = arith.constant dense<0.000000e+00> : vector<4x32xf32>
      %31 = tpu.matmul %28, %30, %cst_23 {dimension_numbers = #tpu.dot_dimension_numbers<[1], [0], [0], [1], [0, 0, 1, 1], [], []>} : vector<4x64xbf16>, vector<64x32xbf16>, vector<4x32xf32> -> vector<4x32xf32>
      %32 = arith.addf %11, %31 : vector<4x32xf32>
      %c0_i32_24 = arith.constant 0 : i32
      %33 = arith.addi %10, %c0_i32_24 : i32
      %c0_25 = arith.constant 0 : index
      %34 = arith.index_cast %33 : i32 to index
      %c1 = arith.constant 1 : index
      %c0_26 = arith.constant 0 : index
      %35 = vector.load %arg3[%c0_25, %34, %c1, %c0_26] : memref<1x5x5x64xbf16, #tpu.memory_space<vmem>>, vector<1x1x4x64xbf16>
      %36 = vector.shape_cast %35 : vector<1x1x4x64xbf16> to vector<4x64xbf16>
      %37 = arith.extf %36 : vector<4x64xbf16> to vector<4x64xf32>
      %c0_27 = arith.constant 0 : index
      %c0_28 = arith.constant 0 : index
      %38 = vector.load %arg1[%c0_27, %c0_28] : memref<1x64xf32, #tpu.memory_space<vmem>>, vector<1x64xf32>
      %39 = vector.broadcast %38 : vector<1x64xf32> to vector<4x64xf32>
      %40 = arith.mulf %37, %39 : vector<4x64xf32>
      %c0_29 = arith.constant 0 : index
      %c0_30 = arith.constant 0 : index
      %41 = vector.load %arg2[%c0_29, %c0_30] : memref<1x64xf32, #tpu.memory_space<vmem>>, vector<1x64xf32>
      %42 = vector.broadcast %41 : vector<1x64xf32> to vector<4x64xf32>
      %43 = arith.addf %40, %42 : vector<4x64xf32>
      %cst_31 = arith.constant 0.000000e+00 : f32
      %44 = vector.broadcast %cst_31 : f32 to vector<4x64xf32>
      %45 = arith.cmpf ogt, %43, %44 : vector<4x64xf32>
      %cst_32 = arith.constant 2.000000e-01 : f32
      %46 = vector.broadcast %cst_32 : f32 to vector<4x64xf32>
      %47 = arith.mulf %46, %43 : vector<4x64xf32>
      %48 = arith.select %45, %43, %47 : vector<4x64xi1>, vector<4x64xf32>
      %49 = arith.truncf %48 : vector<4x64xf32> to vector<4x64xbf16>
      %c1_33 = arith.constant 1 : index
      %c0_34 = arith.constant 0 : index
      %c0_35 = arith.constant 0 : index
      %50 = vector.load %arg4[%c1_33, %c0_34, %c0_35] : memref<4x64x32xbf16, #tpu.memory_space<vmem>>, vector<1x64x32xbf16>
      %51 = vector.shape_cast %50 : vector<1x64x32xbf16> to vector<64x32xbf16>
      %cst_36 = arith.constant dense<0.000000e+00> : vector<4x32xf32>
      %52 = tpu.matmul %49, %51, %cst_36 {dimension_numbers = #tpu.dot_dimension_numbers<[1], [0], [0], [1], [0, 0, 1, 1], [], []>} : vector<4x64xbf16>, vector<64x32xbf16>, vector<4x32xf32> -> vector<4x32xf32>
      %53 = arith.addf %32, %52 : vector<4x32xf32>
      %c1_i32_37 = arith.constant 1 : i32
      %54 = arith.addi %10, %c1_i32_37 : i32
      %c0_38 = arith.constant 0 : index
      %55 = arith.index_cast %54 : i32 to index
      %c0_39 = arith.constant 0 : index
      %c0_40 = arith.constant 0 : index
      %56 = vector.load %arg3[%c0_38, %55, %c0_39, %c0_40] : memref<1x5x5x64xbf16, #tpu.memory_space<vmem>>, vector<1x1x4x64xbf16>
      %57 = vector.shape_cast %56 : vector<1x1x4x64xbf16> to vector<4x64xbf16>
      %58 = arith.extf %57 : vector<4x64xbf16> to vector<4x64xf32>
      %c0_41 = arith.constant 0 : index
      %c0_42 = arith.constant 0 : index
      %59 = vector.load %arg1[%c0_41, %c0_42] : memref<1x64xf32, #tpu.memory_space<vmem>>, vector<1x64xf32>
      %60 = vector.broadcast %59 : vector<1x64xf32> to vector<4x64xf32>
      %61 = arith.mulf %58, %60 : vector<4x64xf32>
      %c0_43 = arith.constant 0 : index
      %c0_44 = arith.constant 0 : index
      %62 = vector.load %arg2[%c0_43, %c0_44] : memref<1x64xf32, #tpu.memory_space<vmem>>, vector<1x64xf32>
      %63 = vector.broadcast %62 : vector<1x64xf32> to vector<4x64xf32>
      %64 = arith.addf %61, %63 : vector<4x64xf32>
      %cst_45 = arith.constant 0.000000e+00 : f32
      %65 = vector.broadcast %cst_45 : f32 to vector<4x64xf32>
      %66 = arith.cmpf ogt, %64, %65 : vector<4x64xf32>
      %cst_46 = arith.constant 2.000000e-01 : f32
      %67 = vector.broadcast %cst_46 : f32 to vector<4x64xf32>
      %68 = arith.mulf %67, %64 : vector<4x64xf32>
      %69 = arith.select %66, %64, %68 : vector<4x64xi1>, vector<4x64xf32>
      %70 = arith.truncf %69 : vector<4x64xf32> to vector<4x64xbf16>
      %c2 = arith.constant 2 : index
      %c0_47 = arith.constant 0 : index
      %c0_48 = arith.constant 0 : index
      %71 = vector.load %arg4[%c2, %c0_47, %c0_48] : memref<4x64x32xbf16, #tpu.memory_space<vmem>>, vector<1x64x32xbf16>
      %72 = vector.shape_cast %71 : vector<1x64x32xbf16> to vector<64x32xbf16>
      %cst_49 = arith.constant dense<0.000000e+00> : vector<4x32xf32>
      %73 = tpu.matmul %70, %72, %cst_49 {dimension_numbers = #tpu.dot_dimension_numbers<[1], [0], [0], [1], [0, 0, 1, 1], [], []>} : vector<4x64xbf16>, vector<64x32xbf16>, vector<4x32xf32> -> vector<4x32xf32>
      %74 = arith.addf %53, %73 : vector<4x32xf32>
      %c1_i32_50 = arith.constant 1 : i32
      %75 = arith.addi %10, %c1_i32_50 : i32
      %c0_51 = arith.constant 0 : index
      %76 = arith.index_cast %75 : i32 to index
      %c1_52 = arith.constant 1 : index
      %c0_53 = arith.constant 0 : index
      %77 = vector.load %arg3[%c0_51, %76, %c1_52, %c0_53] : memref<1x5x5x64xbf16, #tpu.memory_space<vmem>>, vector<1x1x4x64xbf16>
      %78 = vector.shape_cast %77 : vector<1x1x4x64xbf16> to vector<4x64xbf16>
      %79 = arith.extf %78 : vector<4x64xbf16> to vector<4x64xf32>
      %c0_54 = arith.constant 0 : index
      %c0_55 = arith.constant 0 : index
      %80 = vector.load %arg1[%c0_54, %c0_55] : memref<1x64xf32, #tpu.memory_space<vmem>>, vector<1x64xf32>
      %81 = vector.broadcast %80 : vector<1x64xf32> to vector<4x64xf32>
      %82 = arith.mulf %79, %81 : vector<4x64xf32>
      %c0_56 = arith.constant 0 : index
      %c0_57 = arith.constant 0 : index
      %83 = vector.load %arg2[%c0_56, %c0_57] : memref<1x64xf32, #tpu.memory_space<vmem>>, vector<1x64xf32>
      %84 = vector.broadcast %83 : vector<1x64xf32> to vector<4x64xf32>
      %85 = arith.addf %82, %84 : vector<4x64xf32>
      %cst_58 = arith.constant 0.000000e+00 : f32
      %86 = vector.broadcast %cst_58 : f32 to vector<4x64xf32>
      %87 = arith.cmpf ogt, %85, %86 : vector<4x64xf32>
      %cst_59 = arith.constant 2.000000e-01 : f32
      %88 = vector.broadcast %cst_59 : f32 to vector<4x64xf32>
      %89 = arith.mulf %88, %85 : vector<4x64xf32>
      %90 = arith.select %87, %85, %89 : vector<4x64xi1>, vector<4x64xf32>
      %91 = arith.truncf %90 : vector<4x64xf32> to vector<4x64xbf16>
      %c3 = arith.constant 3 : index
      %c0_60 = arith.constant 0 : index
      %c0_61 = arith.constant 0 : index
      %92 = vector.load %arg4[%c3, %c0_60, %c0_61] : memref<4x64x32xbf16, #tpu.memory_space<vmem>>, vector<1x64x32xbf16>
      %93 = vector.shape_cast %92 : vector<1x64x32xbf16> to vector<64x32xbf16>
      %cst_62 = arith.constant dense<0.000000e+00> : vector<4x32xf32>
      %94 = tpu.matmul %91, %93, %cst_62 {dimension_numbers = #tpu.dot_dimension_numbers<[1], [0], [0], [1], [0, 0, 1, 1], [], []>} : vector<4x64xbf16>, vector<64x32xbf16>, vector<4x32xf32> -> vector<4x32xf32>
      %95 = arith.addf %74, %94 : vector<4x32xf32>
      %96 = arith.truncf %95 : vector<4x32xf32> to vector<4x32xbf16>
      %c0_63 = arith.constant 0 : index
      %97 = arith.index_cast %10 : i32 to index
      %c0_64 = arith.constant 0 : index
      %c0_65 = arith.constant 0 : index
      %98 = vector.load %arg5[%c0_63, %97, %c0_64, %c0_65] : memref<1x4x4x32xbf16, #tpu.memory_space<vmem>>, vector<1x1x4x32xbf16>
      %99 = vector.shape_cast %98 : vector<1x1x4x32xbf16> to vector<4x32xbf16>
      %100 = vector.shape_cast %96 : vector<4x32xbf16> to vector<1x1x4x32xbf16>
      tpu.vector_store %arg5[%c0_63, %97, %c0_64, %c0_65], %100 {strides = array<i32>} : memref<1x4x4x32xbf16, #tpu.memory_space<vmem>>, vector<1x1x4x32xbf16>,
      %c0_66 = arith.constant 0 : index
      %c0_67 = arith.constant 0 : index
      %c0_68 = arith.constant 0 : index
      %101 = vector.load %arg6[%c0_66, %c0_67, %c0_68] : memref<1x1x32xf32, #tpu.memory_space<vmem>>, vector<1x1x32xf32>
      %102 = vector.shape_cast %101 : vector<1x1x32xf32> to vector<1x32xf32>
      %cst_69 = arith.constant dense<0.000000e+00> : vector<32xf32>
      %103 = vector.multi_reduction <add>, %95, %cst_69 [0] : vector<4x32xf32> to vector<32xf32>
      %104 = vector.shape_cast %103 : vector<32xf32> to vector<1x32xf32>
      %105 = arith.addf %102, %104 : vector<1x32xf32>
      %c0_70 = arith.constant 0 : index
      %c0_71 = arith.constant 0 : index
      %c0_72 = arith.constant 0 : index
      %106 = vector.load %arg6[%c0_70, %c0_71, %c0_72] : memref<1x1x32xf32, #tpu.memory_space<vmem>>, vector<1x1x32xf32>
      %107 = vector.shape_cast %106 : vector<1x1x32xf32> to vector<1x32xf32>
      %108 = vector.shape_cast %105 : vector<1x32xf32> to vector<1x1x32xf32>
      tpu.vector_store %arg6[%c0_70, %c0_71, %c0_72], %108 {strides = array<i32>} : memref<1x1x32xf32, #tpu.memory_space<vmem>>, vector<1x1x32xf32>,
      %c0_73 = arith.constant 0 : index
      %c0_74 = arith.constant 0 : index
      %c0_75 = arith.constant 0 : index
      %109 = vector.load %arg7[%c0_73, %c0_74, %c0_75] : memref<1x1x32xf32, #tpu.memory_space<vmem>>, vector<1x1x32xf32>
      %110 = vector.shape_cast %109 : vector<1x1x32xf32> to vector<1x32xf32>
      %111 = arith.mulf %95, %95 : vector<4x32xf32>
      %cst_76 = arith.constant dense<0.000000e+00> : vector<32xf32>
      %112 = vector.multi_reduction <add>, %111, %cst_76 [0] : vector<4x32xf32> to vector<32xf32>
      %113 = vector.shape_cast %112 : vector<32xf32> to vector<1x32xf32>
      %114 = arith.addf %110, %113 : vector<1x32xf32>
      %c0_77 = arith.constant 0 : index
      %c0_78 = arith.constant 0 : index
      %c0_79 = arith.constant 0 : index
      %115 = vector.load %arg7[%c0_77, %c0_78, %c0_79] : memref<1x1x32xf32, #tpu.memory_space<vmem>>, vector<1x1x32xf32>
      %116 = vector.shape_cast %115 : vector<1x1x32xf32> to vector<1x32xf32>
      %117 = vector.shape_cast %114 : vector<1x32xf32> to vector<1x1x32xf32>
      tpu.vector_store %arg7[%c0_77, %c0_78, %c0_79], %117 {strides = array<i32>} : memref<1x1x32xf32, #tpu.memory_space<vmem>>, vector<1x1x32xf32>,
    }
    %c4_i32_6 = arith.constant 4 : i32
    return
  }
  func.func @transform_0(%arg0: i32) -> (i32, i32) {
    %c0_i32 = arith.constant 0 : i32
    %c0_i32_0 = arith.constant 0 : i32
    %c0_i32_1 = arith.constant 0 : i32
    return %c0_i32, %c0_i32_0 : i32, i32
  }
  func.func @transform_1(%arg0: i32) -> (i32, i32) {
    %c0_i32 = arith.constant 0 : i32
    %c0_i32_0 = arith.constant 0 : i32
    %c0_i32_1 = arith.constant 0 : i32
    return %c0_i32, %c0_i32_0 : i32, i32
  }
  func.func @transform_2(%arg0: i32) -> (i32, i32, i32, i32) {
    %c0_i32 = arith.constant 0 : i32
    %c0_i32_0 = arith.constant 0 : i32
    %c0_i32_1 = arith.constant 0 : i32
    %c0_i32_2 = arith.constant 0 : i32
    return %arg0, %c0_i32, %c0_i32_0, %c0_i32_1 : i32, i32, i32, i32
  }
  func.func @transform_3(%arg0: i32) -> (i32, i32, i32) {
    %c0_i32 = arith.constant 0 : i32
    %c0_i32_0 = arith.constant 0 : i32
    %c0_i32_1 = arith.constant 0 : i32
    %c0_i32_2 = arith.constant 0 : i32
    return %c0_i32, %c0_i32_0, %c0_i32_1 : i32, i32, i32
  }
  func.func @transform_4(%arg0: i32) -> (i32, i32, i32, i32) {
    %c0_i32 = arith.constant 0 : i32
    %c0_i32_0 = arith.constant 0 : i32
    %c0_i32_1 = arith.constant 0 : i32
    %c0_i32_2 = arith.constant 0 : i32
    return %arg0, %c0_i32, %c0_i32_0, %c0_i32_1 : i32, i32, i32, i32
  }
  func.func @transform_5(%arg0: i32) -> (i32, i32, i32) {
    %c0_i32 = arith.constant 0 : i32
    %c0_i32_0 = arith.constant 0 : i32
    %c0_i32_1 = arith.constant 0 : i32
    return %arg0, %c0_i32, %c0_i32_0 : i32, i32, i32
  }
  func.func @transform_6(%arg0: i32) -> (i32, i32, i32) {
    %c0_i32 = arith.constant 0 : i32
    %c0_i32_0 = arith.constant 0 : i32
    %c0_i32_1 = arith.constant 0 : i32
    return %arg0, %c0_i32, %c0_i32_0 : i32, i32, i32
  }
}

</mosaic_0001>

<llo_original>
// kernel: discriminator_forward.4
$region0: #{discriminator_forward.4}
  #allocation0 [shape = 'u32[]', space=smem, size = 0x4, offset = 0x4, fixed_abs, tag = 'smem constant byte address 0x4 - core index']
  #allocation1 [shape = 'u32[72,128]{1,0:T(1,128)}', space=vmem, size = 0x9000, scoped, tag = 'internal scratch']
  %s0 = inlined_call_operand.vmem [shape: bf16[2,17,17,4], index: 0, kind: input, shape index: {}]
  %s1 = inlined_call_operand.vmem [shape: bf16[4,4,8], index: 1, kind: input, shape index: {}]
  %s2 = inlined_call_operand.vmem [shape: bf16[2,16,16,8], index: 2, kind: output, shape index: {}]
  %s3 = sld [smem:[#allocation0]]
  $region48: #{discriminator_forward.4} parent=0
    _
  %s5 = ssub.s32 1, %s3
  %s6 = scalar_select 0, %s5, %s3
  loop: start=0, step=1, limit=4
  $region2: #{discriminator_forward.4} parent=0 // loop_pre_header
    _
  $region3: #{discriminator_forward.4} parent=0 // loop_header
    %s8 = sphi 0, %s12
    %p9 = scmp.ge.s32.totalorder %s8, 4
    %s18 = sphi 0, %s20
    %s21 = sphi 0, %s18
    %s22 = sphi 0, %s21
    %s38 = sphi 0, %s22
    %s42 = sphi 0, %s42
    %s44 = sphi 0, %s42
    %s45 = sphi 0, %s44
    %s59 = sphi 0, %s45
    %s65 = sphi 0, %s67
    %s68 = sphi 0, %s65
    %s69 = sphi 0, %s68
    %s85 = sphi 0, %s69
  $region4: #{discriminator_forward.4} parent=0 // loop_header_branch
    %11 = sbr.rel (%p9) target = $region8
  $region5: #{discriminator_forward.4} parent=0 // loop_body
    %s13 = ssub.s32 %s8, 1
    %s14 = ssub.s32 %s8, 2
    %s15 = sadd.s32 %s8, 1
    %s16 = ssub.s32 %s8, %s15
    %p17 = scmp.eq.s32.totalorder %s16, 0
    %s19 = sadd.s32 %s18, 1
    %s20 = scalar_select %p17, %s18, %s19
    %p23 = pneg %p17
    %p24 = scmp.eq.s32.totalorder %s8, 1
    %p25 = por %p23, %p24
    %p26 = scmp.ne.s32.totalorder %s18, %s21
    %p27 = scmp.eq.s32.totalorder %s8, 0
    %p28 = por %p26, %p27
    %p29 = scmp.ne.s32.totalorder %s18, %s21
    %p30 = scmp.eq.s32.totalorder %s13, 1
    %p31 = por %p29, %p30
    %p32 = scmp.ne.s32.totalorder %s21, %s22
    %p33 = scmp.eq.s32.totalorder %s13, 0
    %p34 = por %p32, %p33
    %p35 = scmp.ne.s32.totalorder %s21, %s22
    %p36 = scmp.eq.s32.totalorder %s14, 1
    %p37 = por %p35, %p36
    %p39 = scmp.ne.s32.totalorder %s22, %s38
    %p40 = scmp.eq.s32.totalorder %s14, 0
    %p41 = por %p39, %p40
    %s43 = sadd.s32 %s42, 1
    %p46 = scmp.eq.s32.totalorder %s8, 1
    %p47 = scmp.ne.s32.totalorder %s42, %s44
    %p48 = scmp.eq.s32.totalorder %s8, 0
    %p49 = por %p47, %p48
    %p50 = scmp.ne.s32.totalorder %s42, %s44
    %p51 = scmp.eq.s32.totalorder %s13, 1
    %p52 = por %p50, %p51
    %p53 = scmp.ne.s32.totalorder %s44, %s45
    %p54 = scmp.eq.s32.totalorder %s13, 0
    %p55 = por %p53, %p54
    %p56 = scmp.ne.s32.totalorder %s44, %s45
    %p57 = scmp.eq.s32.totalorder %s14, 1
    %p58 = por %p56, %p57
    %p60 = scmp.ne.s32.totalorder %s45, %s59
    %p61 = scmp.eq.s32.totalorder %s14, 0
    %p62 = por %p60, %p61
    %s63 = ssub.s32 %s8, %s15
    %p64 = scmp.eq.s32.totalorder %s63, 0
    %s66 = sadd.s32 %s65, 1
    %s67 = scalar_select %p64, %s65, %s66
    %p70 = pneg %p64
    %p71 = scmp.eq.s32.totalorder %s8, 1
    %p72 = por %p70, %p71
    %p73 = scmp.ne.s32.totalorder %s65, %s68
    %p74 = scmp.eq.s32.totalorder %s8, 0
    %p75 = por %p73, %p74
    %p76 = scmp.ne.s32.totalorder %s65, %s68
    %p77 = scmp.eq.s32.totalorder %s13, 1
    %p78 = por %p76, %p77
    %p79 = scmp.ne.s32.totalorder %s68, %s69
    %p80 = scmp.eq.s32.totalorder %s13, 0
    %p81 = por %p79, %p80
    %p82 = scmp.ne.s32.totalorder %s68, %s69
    %p83 = scmp.eq.s32.totalorder %s14, 1
    %p84 = por %p82, %p83
    %p86 = scmp.ne.s32.totalorder %s69, %s85
    %p87 = scmp.eq.s32.totalorder %s14, 0
    %p88 = por %p86, %p87
    %p89 = scmp.le.s32.totalorder 1, %s8
    %p90 = scmp.lt.s32.totalorder %s8, 3
    %p91 = pnand %p89, %p90
    %p92 = pneg %p91
    // Predicated region
    $region9: #{discriminator_forward.4} parent=5 // pred_check
      _
    $region10: #{discriminator_forward.4} parent=5 // pred_check_branch
      %94 = sbr.rel (%p91) target = $region12
    $region11: #{discriminator_forward.4} parent=5 // pred_region
      %s95 = ssub.s32 %s8, 1
      // Predicated region
      $region13: #{discriminator_forward.4} parent=11 // pred_check
        %p96 = pneg %p55
      $region14: #{discriminator_forward.4} parent=11 // pred_check_branch
        %98 = sbr.rel (%p96) target = $region16
      $region15: #{discriminator_forward.4} parent=11 // pred_region
        _
      $region16: #{discriminator_forward.4} parent=11 // pred_fallthru
        _
    $region12: #{discriminator_forward.4} parent=5 // pred_fallthru
      _
    %p99 = scmp.lt.s32.totalorder %s8, 2
    // Predicated region
    $region17: #{discriminator_forward.4} parent=5 // pred_check
      %p100 = pneg %p99
    $region18: #{discriminator_forward.4} parent=5 // pred_check_branch
      %102 = sbr.rel (%p100) target = $region20
    $region19: #{discriminator_forward.4} parent=5 // pred_region
      // Predicated region
      $region21: #{discriminator_forward.4} parent=19 // pred_check
        %p103 = pneg %p28
      $region22: #{discriminator_forward.4} parent=19 // pred_check_branch
        %105 = sbr.rel (%p103) target = $region24
      $region23: #{discriminator_forward.4} parent=19 // pred_region
        %p106 = scmp.lt.s32.totalorder %s8, 1
        %s107 = scalar_select %p106, %s8, 1
        %s108 = smul.addr %s107, 51
        %s109 = smul.addr %s108, 4
        %s110 = scalar_lea.vmem %s0, %s109
      $region24: #{discriminator_forward.4} parent=19 // pred_fallthru
        _
    $region20: #{discriminator_forward.4} parent=5 // pred_fallthru
      _
    %p111 = scmp.le.s32.totalorder 1, %s8
    %p112 = scmp.lt.s32.totalorder %s8, 3
    %p113 = pnand %p111, %p112
    %p114 = pneg %p113
    // Predicated region
    $region25: #{discriminator_forward.4} parent=5 // pred_check
      _
    $region26: #{discriminator_forward.4} parent=5 // pred_check_branch
      %116 = sbr.rel (%p113) target = $region28
    $region27: #{discriminator_forward.4} parent=5 // pred_region
      %s117 = ssub.s32 %s8, 1
      %p118 = scmp.lt.s32.totalorder %s13, 1
      %s119 = scalar_select %p118, %s13, 1
      %s120 = smul.addr %s119, 51
      %s121 = smul.addr %s120, 4
      %s122 = scalar_lea.vmem %s0, %s121
      %p123 = pneg %p34
      %p124 = pneg %p31
      %p125 = pneg %p55
      %p126 = pneg %p52
      %p127 = pneg %p81
      %p128 = pneg %p78
      %p129 = scmp.lt.s32.totalorder %s13, 1
      %s130 = scalar_select %p129, %s13, 1
      %s131 = smul.addr %s130, 32
      %s132 = smul.addr %s131, 4
      %s133 = scalar_lea.vmem %s2, %s132
      %p134 = scmp.lt.s32.totalorder %s13, 1
      %s135 = scalar_select %p134, %s13, 1
      %s136 = smul.addr %s135, 51
      %s137 = smul.addr %s136, 4
      %s138 = scalar_lea.vmem %s0, %s137
      %p139 = scmp.lt.s32.totalorder %s13, 1
      %s140 = scalar_select %p139, %s13, 1
      %s141 = smul.addr %s140, 32
      %s142 = smul.addr %s141, 4
      %s143 = scalar_lea.vmem %s2, %s142
      loop: start=0, step=1, limit=16
      $region29: #{discriminator_forward.4} parent=27 // loop_pre_header
        _
      $region30: #{discriminator_forward.4} parent=27 // loop_header
        %s146 = sphi 0, %s150
        %p147 = scmp.ge.s32.totalorder %s146, 16
      $region31: #{discriminator_forward.4} parent=27 // loop_header_branch
        %149 = sbr.rel (%p147) target = $region35
      $region32: #{discriminator_forward.4} parent=27 // loop_body
        %s151 = smul.u32 %s146, 3
        %s152 = smul.addr %s151, 4
        %s153 = scalar_lea.vmem %s138, %s152
        %v154 = vld [vmem:[%s153] sm:$0xf]
        %v155 = vld [vmem:[%s153 + $0x4] sm:$0xf]
        %v156 = vld [vmem:[%s1] sm:$0x3]
        %v157 = vld [vmem:[%s153 + $0x8] sm:$0x1]
        %s158 = scalar_lea.vmem %s1, 2
        %v159 = vld [vmem:[%s158] sm:$0x3]
        %v163 = vunpack.c.l.b16 %v154
        %v164 = vunpack.c.l.b16 %v155
        %v165 = vunpack.c.l.b16 %v157
        %v166 = vpack.c.b16 %v164, %v163
        %v167 = vpack.c.b16 %v165, %v165
        %vm168 = vsmask.f32 7424
        %v170 = vshrl.u32 %v166, 16
        %v172 = vshll.u32 %v166, 16
        %v174 = vrot.slane %v172, 1
        %v175 = vor.u32 %v170, %v174
        %v177 = vshll.u32 %v167, 16
        %v179 = vrot.slane %v177, 1
        %v180 = vsel %vm168, %v175, %v179
        %vm181 = vcmask 31744
        %v183 = vsel %vm181, %v180, 0
        %vm185 = vcmask 1041408
        %v187 = vsel %vm185, %v159, 0
        %189 = vmatpush.bf16.msra.mxu0 0
        %190 = vmatpush.bf16.msra.mxu0 0
        %191 = vmatpush.bf16.msra.mxu0 0
        %192 = vmatpush.bf16.msra.mxu0 0
        %193 = vmatpush.bf16.msra.mxu0 0
        %194 = vmatpush.bf16.msra.mxu0 0
        %195 = vmatpush.bf16.msra.mxu0 0
        %196 = vmatpush.bf16.msra.mxu0 %v187
        %197 = vmatmul.bf16.gmra.mxu0 %v183
        %v198 = vpop.f32.mrf.mxu0
        %v199 = vadd.f32 0.0, %v198
        %v200 = vpop.f32.mrf.mxu0
        %v201 = vadd.f32 0.0, %v200
        %202 = vdwg.mxu0
        %v203 = vsel %vm181, %v166, 0
        %v206 = vsel %vm185, %v156, 0
        %208 = vmatpush.bf16.msra.mxu0 0
        %209 = vmatpush.bf16.msra.mxu0 0
        %210 = vmatpush.bf16.msra.mxu0 0
        %211 = vmatpush.bf16.msra.mxu0 0
        %212 = vmatpush.bf16.msra.mxu0 0
        %213 = vmatpush.bf16.msra.mxu0 0
        %214 = vmatpush.bf16.msra.mxu0 0
        %215 = vmatpush.bf16.msra.mxu0 %v206
        %216 = vmatmul.bf16.gmra.mxu0 %v203
        %v217 = vpop.f32.mrf.mxu0
        %v218 = vadd.f32 %v199, %v217
        %v219 = vpop.f32.mrf.mxu0
        %v220 = vadd.f32 %v201, %v219
        %221 = vdwg.mxu0
        %s222 = sadd.s32 %s146, 1
        %s223 = smul.u32 %s222, 3
        %s224 = smul.addr %s223, 4
        %s225 = scalar_lea.vmem %s138, %s224
        %v226 = vld [vmem:[%s225] sm:$0xf]
        %v227 = vld [vmem:[%s225 + $0x4] sm:$0xf]
        %s228 = scalar_lea.vmem %s1, 4
        %v229 = vld [vmem:[%s228] sm:$0x3]
        %v232 = vunpack.c.l.b16 %v226
        %v233 = vunpack.c.l.b16 %v227
        %v234 = vpack.c.b16 %v233, %v232
        %v236 = vsel %vm181, %v234, 0
        %v239 = vsel %vm185, %v229, 0
        %241 = vmatpush.bf16.msra.mxu0 0
        %242 = vmatpush.bf16.msra.mxu0 0
        %243 = vmatpush.bf16.msra.mxu0 0
        %244 = vmatpush.bf16.msra.mxu0 0
        %245 = vmatpush.bf16.msra.mxu0 0
        %246 = vmatpush.bf16.msra.mxu0 0
        %247 = vmatpush.bf16.msra.mxu0 0
        %248 = vmatpush.bf16.msra.mxu0 %v239
        %249 = vmatmul.bf16.gmra.mxu0 %v236
        %v250 = vpop.f32.mrf.mxu0
        %v251 = vadd.f32 0.0, %v250
        %v252 = vpop.f32.mrf.mxu0
        %v253 = vadd.f32 0.0, %v252
        %254 = vdwg.mxu0
        %v255 = vadd.f32 %v218, %v251
        %v256 = vadd.f32 %v220, %v253
        %v257 = vld [vmem:[%s225] sm:$0xf]
        %v258 = vld [vmem:[%s225 + $0x4] sm:$0xf]
        %v259 = vld [vmem:[%s225 + $0x8] sm:$0x1]
        %s260 = scalar_lea.vmem %s1, 6
        %v261 = vld [vmem:[%s260] sm:$0x3]
        %v265 = vunpack.c.l.b16 %v257
        %v266 = vunpack.c.l.b16 %v258
        %v267 = vunpack.c.l.b16 %v259
        %v268 = vpack.c.b16 %v266, %v265
        %v269 = vpack.c.b16 %v267, %v267
        %v271 = vshrl.u32 %v268, 16
        %v273 = vshll.u32 %v268, 16
        %v275 = vrot.slane %v273, 1
        %v276 = vor.u32 %v271, %v275
        %v278 = vshll.u32 %v269, 16
        %v280 = vrot.slane %v278, 1
        %v281 = vsel %vm168, %v276, %v280
        %v283 = vsel %vm181, %v281, 0
        %v286 = vsel %vm185, %v261, 0
        %288 = vmatpush.bf16.msra.mxu0 0
        %289 = vmatpush.bf16.msra.mxu0 0
        %290 = vmatpush.bf16.msra.mxu0 0
        %291 = vmatpush.bf16.msra.mxu0 0
        %292 = vmatpush.bf16.msra.mxu0 0
        %293 = vmatpush.bf16.msra.mxu0 0
        %294 = vmatpush.bf16.msra.mxu0 0
        %295 = vmatpush.bf16.msra.mxu0 %v286
        %296 = vmatmul.bf16.gmra.mxu0 %v283
        %v297 = vpop.f32.mrf.mxu0
        %v298 = vadd.f32 0.0, %v297
        %v299 = vpop.f32.mrf.mxu0
        %v300 = vadd.f32 0.0, %v299
        %301 = vdwg.mxu0
        %v302 = vadd.f32 %v255, %v298
        %v303 = vadd.f32 %v256, %v300
        %vm304 = vcmp.gt.f32.partialorder %v302, 0.0
        %vm305 = vcmp.gt.f32.partialorder %v303, 0.0
        %v306 = vmul.f32 %v302, 0.2
        %v307 = vmul.f32 %v303, 0.2
        %v308 = vsel %vm304, %v302, %v306
        %v309 = vsel %vm305, %v303, %v307
        %v310 = vpack.c.bf16 %v308, %v308
        %v311 = vpack.c.bf16 %v309, %v309
        %s312 = smul.u32 %s146, 2
        %s313 = smul.addr %s312, 4
        %s314 = scalar_lea.vmem %s143, %s313
        %vm315 = vcmask 60416
        %316 = vst.msk [vmem:[%s314] sm:$0xf] %vm315, %v310
        %317 = vst.msk [vmem:[%s314 + $0x4] sm:$0xf] %vm315, %v311
      $region33: #{discriminator_forward.4} parent=27 // loop_footer
        %s150 = sadd.s32 1, %s146
      $region34: #{discriminator_forward.4} parent=27 // loop_footer_branch
        %145 = sbr.rel target = $region30
      $region35: #{discriminator_forward.4} parent=27 // loop_exit
        _
      %p318 = scmp.lt.s32.totalorder %s13, 1
      %s319 = scalar_select %p318, %s13, 1
      %s320 = smul.addr %s319, 32
      %s321 = smul.addr %s320, 4
      %s322 = scalar_lea.vmem %s2, %s321
      // Predicated region
      $region36: #{discriminator_forward.4} parent=27 // pred_check
        %p323 = pneg %p78
      $region37: #{discriminator_forward.4} parent=27 // pred_check_branch
        %325 = sbr.rel (%p323) target = $region39
      $region38: #{discriminator_forward.4} parent=27 // pred_region
        _
      $region39: #{discriminator_forward.4} parent=27 // pred_fallthru
        _
    $region28: #{discriminator_forward.4} parent=5 // pred_fallthru
      _
    %p326 = scmp.le.s32.totalorder 2, %s8
    // Predicated region
    $region40: #{discriminator_forward.4} parent=5 // pred_check
      %p327 = pneg %p326
    $region41: #{discriminator_forward.4} parent=5 // pred_check_branch
      %329 = sbr.rel (%p327) target = $region43
    $region42: #{discriminator_forward.4} parent=5 // pred_region
      %s330 = ssub.s32 %s8, 2
      // Predicated region
      $region44: #{discriminator_forward.4} parent=42 // pred_check
        %p331 = pneg %p84
      $region45: #{discriminator_forward.4} parent=42 // pred_check_branch
        %333 = sbr.rel (%p331) target = $region47
      $region46: #{discriminator_forward.4} parent=42 // pred_region
        %p334 = scmp.lt.s32.totalorder %s14, 1
        %s335 = scalar_select %p334, %s14, 1
        %s336 = smul.addr %s335, 32
        %s337 = smul.addr %s336, 4
        %s338 = scalar_lea.vmem %s2, %s337
      $region47: #{discriminator_forward.4} parent=42 // pred_fallthru
        _
    $region43: #{discriminator_forward.4} parent=5 // pred_fallthru
      _
  $region6: #{discriminator_forward.4} parent=0 // loop_footer
    %s12 = sadd.s32 1, %s8
  $region7: #{discriminator_forward.4} parent=0 // loop_footer_branch
    %7 = sbr.rel target = $region3
  $region8: #{discriminator_forward.4} parent=0 // loop_exit
    _

// kernel: tile.23
$region0: #{tile.23}
  #allocation0 [shape = 's32[1]{0}', space=sflag, size = 0x4, scoped, tag = 'scoped memory for tile.23']
  %s0 = inlined_call_operand.vmem [shape: f32[16], index: 0, kind: input, shape index: {}]
  %s1 = inlined_call_operand.vmem [shape: f32[4,16], index: 1, kind: output, shape index: {}]
  // Predicated region
  $region2: #{tile.23} parent=0 // pred_check
    _
  $region3: #{tile.23} parent=0 // pred_check_branch
    %3 = sbr.rel (0) target = $region5
  $region4: #{tile.23} parent=0 // pred_region
    _
  $region5: #{tile.23} parent=0 // pred_fallthru
    _
  %v4 = vld [vmem:[%s0] ss:$0 sm:$0xff]
  %5 = vst [vmem:[%s1] sm:$0xf] %v4

// kernel: tile.28
$region0: #{tile.28}
  %s0 = inlined_call_operand.vmem [shape: f32[4,16], index: 0, kind: input, shape index: {}]
  %s1 = inlined_call_operand.vmem [shape: f32[1,64], index: 1, kind: output, shape index: {}]
  $region1: #{tile.28} parent=0
    #allocation0 [shape = 'u8[4096]{0}', space=vmem, size = 0x1000, scoped, tag = 'scoped mem for output reshape']
    #allocation1 [shape = 'u8[4096]{0}', space=vmem, size = 0x1000, scoped, tag = 'scoped mem for input reshape']
    %s3 = ssub.s32 16, 1
    %v4 = vld [vmem:[%s0] sm:%s3]
    %5 = vst [vmem:[#allocation1] sm:%s3] %v4
    %v6 = vld [vmem:[#allocation1] sm:$0x1]
    %vm7 = vcmask 130048
    %8 = vst.msk [vmem:[#allocation0] sm:$0x1] %vm7, %v6
    %s9 = scalar_lea.vmem [#allocation1], 3
    %v10 = vld [vmem:[%s9] sm:$0x1]
    %11 = vrot.lane.b32.xlu0 %v10, 48
    %v12 = vpop.permute.xlu0 %11
    %vm13 = vcmask 523648
    %14 = vst.msk [vmem:[#allocation0] sm:$0x1] %vm13, %v12
    %s15 = scalar_lea.vmem [#allocation1], 2
    %v16 = vld [vmem:[%s15] sm:$0x1]
    %17 = vrot.lane.b32.xlu0 %v16, 32
    %v18 = vpop.permute.xlu0 %17
    %vm19 = vcmask 392448
    %20 = vst.msk [vmem:[#allocation0] sm:$0x1] %vm19, %v18
    %s21 = scalar_lea.vmem [#allocation1], 1
    %v22 = vld [vmem:[%s21] sm:$0x1]
    %23 = vrot.lane.b32.xlu0 %v22, 16
    %v24 = vpop.permute.xlu0 %23
    %vm25 = vcmask 261248
    %26 = vst.msk [vmem:[#allocation0] sm:$0x1] %vm25, %v24
    %s28 = ssub.s32 2, 1
    %v29 = vld [vmem:[#allocation0] sm:%s28]
    %s31 = ssub.s32 2, 1
    %32 = vst [vmem:[%s1] sm:%s31] %v29

// kernel: discriminator_forward.5
$region0: #{discriminator_forward.5}
  #allocation0 [shape = 'u32[]', space=smem, size = 0x4, offset = 0x4, fixed_abs, tag = 'smem constant byte address 0x4 - core index']
  #allocation1 [shape = 'u32[72,128]{1,0:T(1,128)}', space=vmem, size = 0x9000, scoped, tag = 'internal scratch']
  %s0 = inlined_call_operand.vmem [shape: bf16[2,9,9,32], index: 0, kind: input, shape index: {}]
  %s1 = inlined_call_operand.vmem [shape: bf16[4,32,16], index: 1, kind: input, shape index: {}]
  %s2 = inlined_call_operand.vmem [shape: bf16[2,8,8,16], index: 2, kind: output, shape index: {0}]
  %s3 = inlined_call_operand.vmem [shape: f32[2,1,16], index: 3, kind: output, shape index: {1}]
  %s4 = inlined_call_operand.vmem [shape: f32[2,1,16], index: 4, kind: output, shape index: {2}]
  %5 = xla_tuple %s2, %s3, %s4
  %s6 = sld [smem:[#allocation0]]
  $region64: #{discriminator_forward.5} parent=0
    _
  %s8 = ssub.s32 1, %s6
  %s9 = scalar_select 0, %s8, %s6
  loop: start=0, step=1, limit=4
  $region2: #{discriminator_forward.5} parent=0 // loop_pre_header
    _
  $region3: #{discriminator_forward.5} parent=0 // loop_header
    %s11 = sphi 0, %s15
    %p12 = scmp.ge.s32.totalorder %s11, 4
    %s21 = sphi 0, %s23
    %s24 = sphi 0, %s21
    %s25 = sphi 0, %s24
    %s41 = sphi 0, %s25
    %s45 = sphi 0, %s45
    %s47 = sphi 0, %s45
    %s48 = sphi 0, %s47
    %s62 = sphi 0, %s48
    %s68 = sphi 0, %s70
    %s71 = sphi 0, %s68
    %s72 = sphi 0, %s71
    %s88 = sphi 0, %s72
    %s94 = sphi 0, %s96
    %s97 = sphi 0, %s94
    %s98 = sphi 0, %s97
    %s114 = sphi 0, %s98
    %s120 = sphi 0, %s122
    %s123 = sphi 0, %s120
    %s124 = sphi 0, %s123
    %s140 = sphi 0, %s124
  $region4: #{discriminator_forward.5} parent=0 // loop_header_branch
    %14 = sbr.rel (%p12) target = $region8
  $region5: #{discriminator_forward.5} parent=0 // loop_body
    %s16 = ssub.s32 %s11, 1
    %s17 = ssub.s32 %s11, 2
    %s18 = sadd.s32 %s11, 1
    %s19 = ssub.s32 %s11, %s18
    %p20 = scmp.eq.s32.totalorder %s19, 0
    %s22 = sadd.s32 %s21, 1
    %s23 = scalar_select %p20, %s21, %s22
    %p26 = pneg %p20
    %p27 = scmp.eq.s32.totalorder %s11, 1
    %p28 = por %p26, %p27
    %p29 = scmp.ne.s32.totalorder %s21, %s24
    %p30 = scmp.eq.s32.totalorder %s11, 0
    %p31 = por %p29, %p30
    %p32 = scmp.ne.s32.totalorder %s21, %s24
    %p33 = scmp.eq.s32.totalorder %s16, 1
    %p34 = por %p32, %p33
    %p35 = scmp.ne.s32.totalorder %s24, %s25
    %p36 = scmp.eq.s32.totalorder %s16, 0
    %p37 = por %p35, %p36
    %p38 = scmp.ne.s32.totalorder %s24, %s25
    %p39 = scmp.eq.s32.totalorder %s17, 1
    %p40 = por %p38, %p39
    %p42 = scmp.ne.s32.totalorder %s25, %s41
    %p43 = scmp.eq.s32.totalorder %s17, 0
    %p44 = por %p42, %p43
    %s46 = sadd.s32 %s45, 1
    %p49 = scmp.eq.s32.totalorder %s11, 1
    %p50 = scmp.ne.s32.totalorder %s45, %s47
    %p51 = scmp.eq.s32.totalorder %s11, 0
    %p52 = por %p50, %p51
    %p53 = scmp.ne.s32.totalorder %s45, %s47
    %p54 = scmp.eq.s32.totalorder %s16, 1
    %p55 = por %p53, %p54
    %p56 = scmp.ne.s32.totalorder %s47, %s48
    %p57 = scmp.eq.s32.totalorder %s16, 0
    %p58 = por %p56, %p57
    %p59 = scmp.ne.s32.totalorder %s47, %s48
    %p60 = scmp.eq.s32.totalorder %s17, 1
    %p61 = por %p59, %p60
    %p63 = scmp.ne.s32.totalorder %s48, %s62
    %p64 = scmp.eq.s32.totalorder %s17, 0
    %p65 = por %p63, %p64
    %s66 = ssub.s32 %s11, %s18
    %p67 = scmp.eq.s32.totalorder %s66, 0
    %s69 = sadd.s32 %s68, 1
    %s70 = scalar_select %p67, %s68, %s69
    %p73 = pneg %p67
    %p74 = scmp.eq.s32.totalorder %s11, 1
    %p75 = por %p73, %p74
    %p76 = scmp.ne.s32.totalorder %s68, %s71
    %p77 = scmp.eq.s32.totalorder %s11, 0
    %p78 = por %p76, %p77
    %p79 = scmp.ne.s32.totalorder %s68, %s71
    %p80 = scmp.eq.s32.totalorder %s16, 1
    %p81 = por %p79, %p80
    %p82 = scmp.ne.s32.totalorder %s71, %s72
    %p83 = scmp.eq.s32.totalorder %s16, 0
    %p84 = por %p82, %p83
    %p85 = scmp.ne.s32.totalorder %s71, %s72
    %p86 = scmp.eq.s32.totalorder %s17, 1
    %p87 = por %p85, %p86
    %p89 = scmp.ne.s32.totalorder %s72, %s88
    %p90 = scmp.eq.s32.totalorder %s17, 0
    %p91 = por %p89, %p90
    %s92 = ssub.s32 %s11, %s18
    %p93 = scmp.eq.s32.totalorder %s92, 0
    %s95 = sadd.s32 %s94, 1
    %s96 = scalar_select %p93, %s94, %s95
    %p99 = pneg %p93
    %p100 = scmp.eq.s32.totalorder %s11, 1
    %p101 = por %p99, %p100
    %p102 = scmp.ne.s32.totalorder %s94, %s97
    %p103 = scmp.eq.s32.totalorder %s11, 0
    %p104 = por %p102, %p103
    %p105 = scmp.ne.s32.totalorder %s94, %s97
    %p106 = scmp.eq.s32.totalorder %s16, 1
    %p107 = por %p105, %p106
    %p108 = scmp.ne.s32.totalorder %s97, %s98
    %p109 = scmp.eq.s32.totalorder %s16, 0
    %p110 = por %p108, %p109
    %p111 = scmp.ne.s32.totalorder %s97, %s98
    %p112 = scmp.eq.s32.totalorder %s17, 1
    %p113 = por %p111, %p112
    %p115 = scmp.ne.s32.totalorder %s98, %s114
    %p116 = scmp.eq.s32.totalorder %s17, 0
    %p117 = por %p115, %p116
    %s118 = ssub.s32 %s11, %s18
    %p119 = scmp.eq.s32.totalorder %s118, 0
    %s121 = sadd.s32 %s120, 1
    %s122 = scalar_select %p119, %s120, %s121
    %p125 = pneg %p119
    %p126 = scmp.eq.s32.totalorder %s11, 1
    %p127 = por %p125, %p126
    %p128 = scmp.ne.s32.totalorder %s120, %s123
    %p129 = scmp.eq.s32.totalorder %s11, 0
    %p130 = por %p128, %p129
    %p131 = scmp.ne.s32.totalorder %s120, %s123
    %p132 = scmp.eq.s32.totalorder %s16, 1
    %p133 = por %p131, %p132
    %p134 = scmp.ne.s32.totalorder %s123, %s124
    %p135 = scmp.eq.s32.totalorder %s16, 0
    %p136 = por %p134, %p135
    %p137 = scmp.ne.s32.totalorder %s123, %s124
    %p138 = scmp.eq.s32.totalorder %s17, 1
    %p139 = por %p137, %p138
    %p141 = scmp.ne.s32.totalorder %s124, %s140
    %p142 = scmp.eq.s32.totalorder %s17, 0
    %p143 = por %p141, %p142
    %p144 = scmp.le.s32.totalorder 1, %s11
    %p145 = scmp.lt.s32.totalorder %s11, 3
    %p146 = pnand %p144, %p145
    %p147 = pneg %p146
    // Predicated region
    $region9: #{discriminator_forward.5} parent=5 // pred_check
      _
    $region10: #{discriminator_forward.5} parent=5 // pred_check_branch
      %149 = sbr.rel (%p146) target = $region12
    $region11: #{discriminator_forward.5} parent=5 // pred_region
      %s150 = ssub.s32 %s11, 1
      // Predicated region
      $region13: #{discriminator_forward.5} parent=11 // pred_check
        %p151 = pneg %p58
      $region14: #{discriminator_forward.5} parent=11 // pred_check_branch
        %153 = sbr.rel (%p151) target = $region16
      $region15: #{discriminator_forward.5} parent=11 // pred_region
        _
      $region16: #{discriminator_forward.5} parent=11 // pred_fallthru
        _
    $region12: #{discriminator_forward.5} parent=5 // pred_fallthru
      _
    %p154 = scmp.lt.s32.totalorder %s11, 2
    // Predicated region
    $region17: #{discriminator_forward.5} parent=5 // pred_check
      %p155 = pneg %p154
    $region18: #{discriminator_forward.5} parent=5 // pred_check_branch
      %157 = sbr.rel (%p155) target = $region20
    $region19: #{discriminator_forward.5} parent=5 // pred_region
      // Predicated region
      $region21: #{discriminator_forward.5} parent=19 // pred_check
        %p158 = pneg %p31
      $region22: #{discriminator_forward.5} parent=19 // pred_check_branch
        %160 = sbr.rel (%p158) target = $region24
      $region23: #{discriminator_forward.5} parent=19 // pred_region
        %p161 = scmp.lt.s32.totalorder %s11, 1
        %s162 = scalar_select %p161, %s11, 1
        %s163 = smul.addr %s162, 18
        %s164 = smul.addr %s163, 4
        %s165 = scalar_lea.vmem %s0, %s164
      $region24: #{discriminator_forward.5} parent=19 // pred_fallthru
        _
    $region20: #{discriminator_forward.5} parent=5 // pred_fallthru
      _
    %p166 = scmp.le.s32.totalorder 1, %s11
    %p167 = scmp.lt.s32.totalorder %s11, 3
    %p168 = pnand %p166, %p167
    %p169 = pneg %p168
    // Predicated region
    $region25: #{discriminator_forward.5} parent=5 // pred_check
      _
    $region26: #{discriminator_forward.5} parent=5 // pred_check_branch
      %171 = sbr.rel (%p168) target = $region28
    $region27: #{discriminator_forward.5} parent=5 // pred_region
      %s172 = ssub.s32 %s11, 1
      %p173 = scmp.lt.s32.totalorder %s16, 1
      %s174 = scalar_select %p173, %s16, 1
      %s175 = smul.addr %s174, 18
      %s176 = smul.addr %s175, 4
      %s177 = scalar_lea.vmem %s0, %s176
      %p178 = pneg %p37
      %p179 = pneg %p34
      %p180 = pneg %p58
      %p181 = pneg %p55
      %p182 = pneg %p84
      %p183 = pneg %p81
      %p184 = scmp.lt.s32.totalorder %s16, 1
      %s185 = scalar_select %p184, %s16, 1
      %s186 = smul.addr %s185, 8
      %s187 = smul.addr %s186, 4
      %s188 = scalar_lea.vmem %s2, %s187
      %p189 = pneg %p110
      %p190 = pneg %p107
      %p191 = scmp.lt.s32.totalorder %s16, 1
      %s192 = scalar_select %p191, %s16, 1
      %s193 = scalar_lea.vmem %s3, %s192
      %p194 = pneg %p136
      %p195 = pneg %p133
      %p196 = scmp.lt.s32.totalorder %s16, 1
      %s197 = scalar_select %p196, %s16, 1
      %s198 = scalar_lea.vmem %s4, %s197
      %p199 = scmp.lt.s32.totalorder %s16, 1
      %s200 = scalar_select %p199, %s16, 1
      %s201 = smul.addr %s200, 18
      %s202 = smul.addr %s201, 4
      %s203 = scalar_lea.vmem %s0, %s202
      %p204 = scmp.lt.s32.totalorder %s16, 1
      %s205 = scalar_select %p204, %s16, 1
      %s206 = smul.addr %s205, 8
      %s207 = smul.addr %s206, 4
      %s208 = scalar_lea.vmem %s2, %s207
      %p209 = scmp.lt.s32.totalorder %s16, 1
      %s210 = scalar_select %p209, %s16, 1
      %s211 = scalar_lea.vmem %s3, %s210
      %p212 = scmp.lt.s32.totalorder %s16, 1
      %s213 = scalar_select %p212, %s16, 1
      %s214 = scalar_lea.vmem %s4, %s213
      %vm216 = vcmask 122880
      %217 = vst.msk [vmem:[%s211] sm:$0x1] %vm216, 0.0
      %218 = vst.msk [vmem:[%s214] sm:$0x1] %vm216, 0.0
      loop: start=0, step=1, limit=8
      $region29: #{discriminator_forward.5} parent=27 // loop_pre_header
        _
      $region30: #{discriminator_forward.5} parent=27 // loop_header
        %s220 = sphi 0, %s224
        %p221 = scmp.ge.s32.totalorder %s220, 8
      $region31: #{discriminator_forward.5} parent=27 // loop_header_branch
        %223 = sbr.rel (%p221) target = $region35
      $region32: #{discriminator_forward.5} parent=27 // loop_body
        %s225 = smul.u32 %s220, 2
        %s226 = smul.addr %s225, 4
        %s227 = scalar_lea.vmem %s203, %s226
        %v228 = vld [vmem:[%s227] sm:$0xf]
        %v229 = vld [vmem:[%s1] sm:$0xf]
        %v230 = vld [vmem:[%s1 + $0x4] sm:$0xf]
        %v231 = vld [vmem:[%s1 + $0x8] sm:$0xf]
        %v232 = vld [vmem:[%s1 + $0xc] sm:$0xf]
        %v233 = vld [vmem:[%s227 + $0x4] sm:$0x1]
        %s234 = scalar_lea.vmem %s1, 16
        %v235 = vld [vmem:[%s234] sm:$0xf]
        %v236 = vld [vmem:[%s234 + $0x4] sm:$0xf]
        %v237 = vld [vmem:[%s234 + $0x8] sm:$0xf]
        %v238 = vld [vmem:[%s234 + $0xc] sm:$0xf]
        %v241 = vunpack.c.l.b16 %v228
        %v242 = vunpack.c.l.b16 %v233
        %v243 = vpack.c.b16 %v242, %v241
        %v245 = vshrl.u32 %v243, 16
        %v247 = vshll.u32 %v243, 16
        %v249 = vrot.slane %v247, 1
        %v250 = vor.u32 %v245, %v249
        %v255 = vunpack.c.l.b16 %v235
        %v256 = vunpack.c.l.b16 %v236
        %v257 = vunpack.c.l.b16 %v237
        %v258 = vunpack.c.l.b16 %v238
        %v259 = vpack.c.b16 %v256, %v255
        %v260 = vpack.c.b16 %v258, %v257
        %vm263 = vcmask 261120
        %v265 = vsel %vm263, %v250, 0
        %267 = vmatpush.bf16.msra.mxu0 0
        %268 = vmatpush.bf16.msra.mxu0 0
        %269 = vmatpush.bf16.msra.mxu0 0
        %270 = vmatpush.bf16.msra.mxu0 0
        %271 = vmatpush.bf16.msra.mxu0 0
        %272 = vmatpush.bf16.msra.mxu0 0
        %273 = vmatpush.bf16.msra.mxu0 %v260
        %274 = vmatpush.bf16.msra.mxu0 %v259
        %275 = vmatmul.bf16.gmra.mxu0 %v265
        %v276 = vpop.f32.mrf.mxu0
        %v277 = vadd.f32 0.0, %v276
        %v278 = vpop.f32.mrf.mxu0
        %279 = vdwg.mxu0
        %v284 = vunpack.c.l.b16 %v229
        %v285 = vunpack.c.l.b16 %v230
        %v286 = vunpack.c.l.b16 %v231
        %v287 = vunpack.c.l.b16 %v232
        %v288 = vpack.c.b16 %v285, %v284
        %v289 = vpack.c.b16 %v287, %v286
        %v293 = vsel %vm263, %v228, 0
        %295 = vmatpush.bf16.msra.mxu0 0
        %296 = vmatpush.bf16.msra.mxu0 0
        %297 = vmatpush.bf16.msra.mxu0 0
        %298 = vmatpush.bf16.msra.mxu0 0
        %299 = vmatpush.bf16.msra.mxu0 0
        %300 = vmatpush.bf16.msra.mxu0 0
        %301 = vmatpush.bf16.msra.mxu0 %v289
        %302 = vmatpush.bf16.msra.mxu0 %v288
        %303 = vmatmul.bf16.gmra.mxu0 %v293
        %v304 = vpop.f32.mrf.mxu0
        %v305 = vadd.f32 %v277, %v304
        %v306 = vpop.f32.mrf.mxu0
        %307 = vdwg.mxu0
        %s308 = sadd.s32 %s220, 1
        %s309 = smul.u32 %s308, 2
        %s310 = smul.addr %s309, 4
        %s311 = scalar_lea.vmem %s203, %s310
        %v312 = vld [vmem:[%s311] sm:$0xf]
        %s313 = scalar_lea.vmem %s1, 32
        %v314 = vld [vmem:[%s313] sm:$0xf]
        %v315 = vld [vmem:[%s313 + $0x4] sm:$0xf]
        %v316 = vld [vmem:[%s313 + $0x8] sm:$0xf]
        %v317 = vld [vmem:[%s313 + $0xc] sm:$0xf]
        %v322 = vunpack.c.l.b16 %v314
        %v323 = vunpack.c.l.b16 %v315
        %v324 = vunpack.c.l.b16 %v316
        %v325 = vunpack.c.l.b16 %v317
        %v326 = vpack.c.b16 %v323, %v322
        %v327 = vpack.c.b16 %v325, %v324
        %v331 = vsel %vm263, %v312, 0
        %333 = vmatpush.bf16.msra.mxu0 0
        %334 = vmatpush.bf16.msra.mxu0 0
        %335 = vmatpush.bf16.msra.mxu0 0
        %336 = vmatpush.bf16.msra.mxu0 0
        %337 = vmatpush.bf16.msra.mxu0 0
        %338 = vmatpush.bf16.msra.mxu0 0
        %339 = vmatpush.bf16.msra.mxu0 %v327
        %340 = vmatpush.bf16.msra.mxu0 %v326
        %341 = vmatmul.bf16.gmra.mxu0 %v331
        %v342 = vpop.f32.mrf.mxu0
        %v343 = vadd.f32 0.0, %v342
        %v344 = vpop.f32.mrf.mxu0
        %345 = vdwg.mxu0
        %v346 = vadd.f32 %v305, %v343
        %v347 = vld [vmem:[%s311] sm:$0xf]
        %v348 = vld [vmem:[%s311 + $0x4] sm:$0x1]
        %s349 = scalar_lea.vmem %s1, 48
        %v350 = vld [vmem:[%s349] sm:$0xf]
        %v351 = vld [vmem:[%s349 + $0x4] sm:$0xf]
        %v352 = vld [vmem:[%s349 + $0x8] sm:$0xf]
        %v353 = vld [vmem:[%s349 + $0xc] sm:$0xf]
        %v356 = vunpack.c.l.b16 %v347
        %v357 = vunpack.c.l.b16 %v348
        %v358 = vpack.c.b16 %v357, %v356
        %v360 = vshrl.u32 %v358, 16
        %v362 = vshll.u32 %v358, 16
        %v364 = vrot.slane %v362, 1
        %v365 = vor.u32 %v360, %v364
        %v370 = vunpack.c.l.b16 %v350
        %v371 = vunpack.c.l.b16 %v351
        %v372 = vunpack.c.l.b16 %v352
        %v373 = vunpack.c.l.b16 %v353
        %v374 = vpack.c.b16 %v371, %v370
        %v375 = vpack.c.b16 %v373, %v372
        %v379 = vsel %vm263, %v365, 0
        %381 = vmatpush.bf16.msra.mxu0 0
        %382 = vmatpush.bf16.msra.mxu0 0
        %383 = vmatpush.bf16.msra.mxu0 0
        %384 = vmatpush.bf16.msra.mxu0 0
        %385 = vmatpush.bf16.msra.mxu0 0
        %386 = vmatpush.bf16.msra.mxu0 0
        %387 = vmatpush.bf16.msra.mxu0 %v375
        %388 = vmatpush.bf16.msra.mxu0 %v374
        %389 = vmatmul.bf16.gmra.mxu0 %v379
        %v390 = vpop.f32.mrf.mxu0
        %v391 = vadd.f32 0.0, %v390
        %v392 = vpop.f32.mrf.mxu0
        %393 = vdwg.mxu0
        %v394 = vadd.f32 %v346, %v391
        %v395 = vpack.c.bf16 %v394, %v394
        %s396 = smul.addr %s220, 4
        %s397 = scalar_lea.vmem %s208, %s396
        %vm398 = vcmask 125952
        %399 = vst.msk [vmem:[%s397] sm:$0xf] %vm398, %v395
        %v400 = vld [vmem:[%s211] sm:$0x1]
        %vm401 = vcmask 130048
        %v402 = vsel %vm401, %v394, 0.0
        %v403 = vrot.slane %v402, 4
        %v404 = vadd.f32 %v402, %v403
        %v405 = vrot.slane %v404, 2
        %v406 = vadd.f32 %v404, %v405
        %v407 = vrot.slane %v406, 1
        %v408 = vadd.f32 %v406, %v407
        %v409 = vadd.f32 %v400, %v408
        %410 = vst.msk [vmem:[%s211] sm:$0x1] %vm216, %v409
        %v411 = vld [vmem:[%s214] sm:$0x1]
        %v412 = vmul.f32 %v394, %v394
        %v413 = vsel %vm401, %v412, 0.0
        %v414 = vrot.slane %v413, 4
        %v415 = vadd.f32 %v413, %v414
        %v416 = vrot.slane %v415, 2
        %v417 = vadd.f32 %v415, %v416
        %v418 = vrot.slane %v417, 1
        %v419 = vadd.f32 %v417, %v418
        %v420 = vadd.f32 %v411, %v419
        %421 = vst.msk [vmem:[%s214] sm:$0x1] %vm216, %v420
      $region33: #{discriminator_forward.5} parent=27 // loop_footer
        %s224 = sadd.s32 1, %s220
      $region34: #{discriminator_forward.5} parent=27 // loop_footer_branch
        %219 = sbr.rel target = $region30
      $region35: #{discriminator_forward.5} parent=27 // loop_exit
        _
      %p422 = scmp.lt.s32.totalorder %s16, 1
      %s423 = scalar_select %p422, %s16, 1
      %s424 = smul.addr %s423, 8
      %s425 = smul.addr %s424, 4
      %s426 = scalar_lea.vmem %s2, %s425
      %p427 = scmp.lt.s32.totalorder %s16, 1
      %s428 = scalar_select %p427, %s16, 1
      %s429 = scalar_lea.vmem %s3, %s428
      %p430 = scmp.lt.s32.totalorder %s16, 1
      %s431 = scalar_select %p430, %s16, 1
      %s432 = scalar_lea.vmem %s4, %s431
      // Predicated region
      $region36: #{discriminator_forward.5} parent=27 // pred_check
        %p433 = pneg %p81
      $region37: #{discriminator_forward.5} parent=27 // pred_check_branch
        %435 = sbr.rel (%p433) target = $region39
      $region38: #{discriminator_forward.5} parent=27 // pred_region
        _
      $region39: #{discriminator_forward.5} parent=27 // pred_fallthru
        _
      // Predicated region
      $region40: #{discriminator_forward.5} parent=27 // pred_check
        %p436 = pneg %p107
      $region41: #{discriminator_forward.5} parent=27 // pred_check_branch
        %438 = sbr.rel (%p436) target = $region43
      $region42: #{discriminator_forward.5} parent=27 // pred_region
        _
      $region43: #{discriminator_forward.5} parent=27 // pred_fallthru
        _
      // Predicated region
      $region44: #{discriminator_forward.5} parent=27 // pred_check
        %p439 = pneg %p133
      $region45: #{discriminator_forward.5} parent=27 // pred_check_branch
        %441 = sbr.rel (%p439) target = $region47
      $region46: #{discriminator_forward.5} parent=27 // pred_region
        _
      $region47: #{discriminator_forward.5} parent=27 // pred_fallthru
        _
    $region28: #{discriminator_forward.5} parent=5 // pred_fallthru
      _
    %p442 = scmp.le.s32.totalorder 2, %s11
    // Predicated region
    $region48: #{discriminator_forward.5} parent=5 // pred_check
      %p443 = pneg %p442
    $region49: #{discriminator_forward.5} parent=5 // pred_check_branch
      %445 = sbr.rel (%p443) target = $region51
    $region50: #{discriminator_forward.5} parent=5 // pred_region
      %s446 = ssub.s32 %s11, 2
      // Predicated region
      $region52: #{discriminator_forward.5} parent=50 // pred_check
        %p447 = pneg %p87
      $region53: #{discriminator_forward.5} parent=50 // pred_check_branch
        %449 = sbr.rel (%p447) target = $region55
      $region54: #{discriminator_forward.5} parent=50 // pred_region
        %p450 = scmp.lt.s32.totalorder %s17, 1
        %s451 = scalar_select %p450, %s17, 1
        %s452 = smul.addr %s451, 8
        %s453 = smul.addr %s452, 4
        %s454 = scalar_lea.vmem %s2, %s453
      $region55: #{discriminator_forward.5} parent=50 // pred_fallthru
        _
      // Predicated region
      $region56: #{discriminator_forward.5} parent=50 // pred_check
        %p455 = pneg %p113
      $region57: #{discriminator_forward.5} parent=50 // pred_check_branch
        %457 = sbr.rel (%p455) target = $region59
      $region58: #{discriminator_forward.5} parent=50 // pred_region
        %p458 = scmp.lt.s32.totalorder %s17, 1
        %s459 = scalar_select %p458, %s17, 1
        %s460 = scalar_lea.vmem %s3, %s459
      $region59: #{discriminator_forward.5} parent=50 // pred_fallthru
        _
      // Predicated region
      $region60: #{discriminator_forward.5} parent=50 // pred_check
        %p461 = pneg %p139
      $region61: #{discriminator_forward.5} parent=50 // pred_check_branch
        %463 = sbr.rel (%p461) target = $region63
      $region62: #{discriminator_forward.5} parent=50 // pred_region
        %p464 = scmp.lt.s32.totalorder %s17, 1
        %s465 = scalar_select %p464, %s17, 1
        %s466 = scalar_lea.vmem %s4, %s465
      $region63: #{discriminator_forward.5} parent=50 // pred_fallthru
        _
    $region51: #{discriminator_forward.5} parent=5 // pred_fallthru
      _
  $region6: #{discriminator_forward.5} parent=0 // loop_footer
    %s15 = sadd.s32 1, %s11
  $region7: #{discriminator_forward.5} parent=0 // loop_footer_branch
    %10 = sbr.rel target = $region3
  $region8: #{discriminator_forward.5} parent=0 // loop_exit
    _

// kernel: tile.33
$region0: #{tile.33}
  #allocation0 [shape = 's32[1]{0}', space=sflag, size = 0x4, scoped, tag = 'scoped memory for tile.33']
  %s0 = inlined_call_operand.vmem [shape: f32[32], index: 0, kind: input, shape index: {}]
  %s1 = inlined_call_operand.vmem [shape: f32[16,32], index: 1, kind: output, shape index: {}]
  // Predicated region
  $region2: #{tile.33} parent=0 // pred_check
    _
  $region3: #{tile.33} parent=0 // pred_check_branch
    %3 = sbr.rel (0) target = $region5
  $region4: #{tile.33} parent=0 // pred_region
    _
  $region5: #{tile.33} parent=0 // pred_fallthru
    _
  %v4 = vld [vmem:[%s0] ss:$0 sm:$0xff]
  %5 = vst [vmem:[%s1] sm:$0xff] %v4
  %s6 = scalar_lea.vmem %s1, 8
  %7 = vst [vmem:[%s6] sm:$0xff] %v4

// kernel: tile.38
$region0: #{tile.38}
  %s0 = inlined_call_operand.vmem [shape: f32[16,32], index: 0, kind: input, shape index: {}]
  %s1 = inlined_call_operand.vmem [shape: f32[1,512], index: 1, kind: output, shape index: {}]
  $region1: #{tile.38} parent=0
    #allocation0 [shape = 'u8[16384]{0}', space=vmem, size = 0x4000, scoped, tag = 'scoped mem for output reshape']
    %v2 = vld [vmem:[%s0] ss:$4 sm:$0xf]
    %vm3 = vcmask 261120
    %4 = vst.msk [vmem:[#allocation0] ss:$8 sm:$0xf] %vm3, %v2
    %s5 = scalar_lea.vmem %s0, 3
    %v6 = vld [vmem:[%s5] ss:$4 sm:$0xf]
    %7 = vrot.lane.b32.xlu0 %v6, 96
    %v8 = vpop.permute.xlu0 %7
    %vm9 = vcmask 1048320
    %10 = vst.msk [vmem:[#allocation0] ss:$8 sm:$0xf] %vm9, %v8
    %s11 = scalar_lea.vmem %s0, 2
    %v12 = vld [vmem:[%s11] ss:$4 sm:$0xf]
    %13 = vrot.lane.b32.xlu0 %v12, 64
    %v14 = vpop.permute.xlu0 %13
    %vm15 = vcmask 785920
    %16 = vst.msk [vmem:[#allocation0] ss:$8 sm:$0xf] %vm15, %v14
    %s17 = scalar_lea.vmem %s0, 1
    %v18 = vld [vmem:[%s17] ss:$4 sm:$0xf]
    %19 = vrot.lane.b32.xlu0 %v18, 32
    %v20 = vpop.permute.xlu0 %19
    %vm21 = vcmask 523520
    %22 = vst.msk [vmem:[#allocation0] ss:$8 sm:$0xf] %vm21, %v20
    %s24 = ssub.s32 2, 1
    %v25 = vld [vmem:[#allocation0] sm:%s24]
    %s27 = ssub.s32 2, 1
    %28 = vst [vmem:[%s1] sm:%s27] %v25
    %s29 = scalar_lea.vmem [#allocation0], 8
    %v30 = vld [vmem:[%s29] sm:%s24]
    %s32 = ssub.s32 2, 1
    %s33 = scalar_lea.vmem %s1, 1
    %34 = vst [vmem:[%s33] sm:%s32] %v30
    %s35 = scalar_lea.vmem [#allocation0], 16
    %v36 = vld [vmem:[%s35] sm:%s24]
    %s38 = ssub.s32 2, 1
    %s39 = scalar_lea.vmem %s1, 2
    %40 = vst [vmem:[%s39] sm:%s38] %v36
    %s41 = scalar_lea.vmem [#allocation0], 24
    %v42 = vld [vmem:[%s41] sm:%s24]
    %s44 = ssub.s32 2, 1
    %s45 = scalar_lea.vmem %s1, 3
    %46 = vst [vmem:[%s45] sm:%s44] %v42

// kernel: discriminator_forward.7
$region0: #{discriminator_forward.7}
  #allocation0 [shape = 'u32[]', space=smem, size = 0x4, offset = 0x4, fixed_abs, tag = 'smem constant byte address 0x4 - core index']
  #allocation1 [shape = 'u32[72,128]{1,0:T(1,128)}', space=vmem, size = 0x9000, scoped, tag = 'internal scratch']
  %s0 = inlined_call_operand.vmem [shape: f32[1,512], index: 0, kind: input, shape index: {}]
  %s1 = inlined_call_operand.vmem [shape: f32[1,512], index: 1, kind: input, shape index: {}]
  %s2 = inlined_call_operand.vmem [shape: bf16[2,512], index: 2, kind: input, shape index: {}]
  %s3 = inlined_call_operand.vmem [shape: bf16[512,1], index: 3, kind: input, shape index: {}]
  %s4 = inlined_call_operand.vmem [shape: f32[2,1], index: 4, kind: output, shape index: {}]
  %s5 = sld [smem:[#allocation0]]
  $region26: #{discriminator_forward.7} parent=0
    _
  %s7 = ssub.s32 1, %s5
  %s8 = scalar_select 0, %s7, %s5
  // Predicated region
  $region2: #{discriminator_forward.7} parent=0 // pred_check
    _
  $region3: #{discriminator_forward.7} parent=0 // pred_check_branch
    %10 = sbr.rel (0) target = $region5
  $region4: #{discriminator_forward.7} parent=0 // pred_region
    _
  $region5: #{discriminator_forward.7} parent=0 // pred_fallthru
    _
  // Predicated region
  $region6: #{discriminator_forward.7} parent=0 // pred_check
    _
  $region7: #{discriminator_forward.7} parent=0 // pred_check_branch
    %12 = sbr.rel (0) target = $region9
  $region8: #{discriminator_forward.7} parent=0 // pred_region
    _
  $region9: #{discriminator_forward.7} parent=0 // pred_fallthru
    _
  // Predicated region
  $region10: #{discriminator_forward.7} parent=0 // pred_check
    _
  $region11: #{discriminator_forward.7} parent=0 // pred_check_branch
    %14 = sbr.rel (0) target = $region13
  $region12: #{discriminator_forward.7} parent=0 // pred_region
    _
  $region13: #{discriminator_forward.7} parent=0 // pred_fallthru
    _
  // Predicated region
  $region14: #{discriminator_forward.7} parent=0 // pred_check
    _
  $region15: #{discriminator_forward.7} parent=0 // pred_check_branch
    %16 = sbr.rel (0) target = $region17
  $region16: #{discriminator_forward.7} parent=0 // pred_region
    _
  $region17: #{discriminator_forward.7} parent=0 // pred_fallthru
    _
  %v17 = vld [vmem:[%s2] sm:$0xf]
  %v18 = vunpack.c.l.bf16 %v17
  %v19 = vld [vmem:[%s0] sm:$0xf]
  %v21 = vperm.slane %v19, 0
  %v22 = vperm.slane %v19, 1
  %v23 = vperm.slane %v19, 2
  %v24 = vperm.slane %v19, 3
  %v25 = vrot.slane %v22, 6
  %v26 = vrot.slane %v23, 4
  %v27 = vrot.slane %v24, 2
  %vm28 = vcmask 1041408
  %v29 = vsel %vm28, %v21, %v25
  %vm30 = vcmask 1045508
  %v31 = vsel %vm30, %v26, %v27
  %vm32 = vcmask 1043456
  %v33 = vsel %vm32, %v29, %v31
  %v35 = vmul.f32 %v18, %v33
  %v36 = vld [vmem:[%s1] sm:$0xf]
  %v38 = vperm.slane %v36, 0
  %v39 = vperm.slane %v36, 1
  %v40 = vperm.slane %v36, 2
  %v41 = vperm.slane %v36, 3
  %v42 = vrot.slane %v39, 6
  %v43 = vrot.slane %v40, 4
  %v44 = vrot.slane %v41, 2
  %v45 = vsel %vm28, %v38, %v42
  %v46 = vsel %vm30, %v43, %v44
  %v47 = vsel %vm32, %v45, %v46
  %v49 = vadd.f32 %v35, %v47
  %vm50 = vcmp.gt.f32.partialorder %v49, 0.0
  %v51 = vmul.f32 %v49, 0.2
  %v52 = vsel %vm50, %v49, %v51
  %54 = vst [vmem:[#allocation1] ss:$4 sm:$0xff] %v52
  %v55 = vld.sshfl [vmem:[#allocation1] sm:$0xff pattern:$0x73625140]
  %v56 = vld.sshfl [vmem:[#allocation1 + $0x8] sm:$0xff pattern:$0x73625140]
  %v57 = vld.sshfl [vmem:[#allocation1 + $0x10] sm:$0xff pattern:$0x73625140]
  %v58 = vld.sshfl [vmem:[#allocation1 + $0x18] sm:$0xff pattern:$0x73625140]
  %v63 = vpack.c.bf16 %v55, %v55
  %v64 = vpack.c.bf16 %v56, %v56
  %v65 = vpack.c.bf16 %v57, %v57
  %v66 = vpack.c.bf16 %v58, %v58
  %v67 = vld [vmem:[%s3] sm:$0xf]
  %v68 = vld [vmem:[%s3 + $0x4] sm:$0xf]
  %v69 = vld [vmem:[%s3 + $0x8] sm:$0xf]
  %v70 = vld [vmem:[%s3 + $0xc] sm:$0xf]
  %v71 = vld [vmem:[%s3 + $0x10] sm:$0xf]
  %v72 = vld [vmem:[%s3 + $0x14] sm:$0xf]
  %v73 = vld [vmem:[%s3 + $0x18] sm:$0xf]
  %v74 = vld [vmem:[%s3 + $0x1c] sm:$0xf]
  %v75 = vld [vmem:[%s3 + $0x20] sm:$0xf]
  %v76 = vld [vmem:[%s3 + $0x24] sm:$0xf]
  %v77 = vld [vmem:[%s3 + $0x28] sm:$0xf]
  %v78 = vld [vmem:[%s3 + $0x2c] sm:$0xf]
  %v79 = vld [vmem:[%s3 + $0x30] sm:$0xf]
  %v80 = vld [vmem:[%s3 + $0x34] sm:$0xf]
  %v81 = vld [vmem:[%s3 + $0x38] sm:$0xf]
  %v82 = vld [vmem:[%s3 + $0x3c] sm:$0xf]
  %v83 = vld [vmem:[%s3 + $0x40] sm:$0xf]
  %v84 = vld [vmem:[%s3 + $0x44] sm:$0xf]
  %v85 = vld [vmem:[%s3 + $0x48] sm:$0xf]
  %v86 = vld [vmem:[%s3 + $0x4c] sm:$0xf]
  %v87 = vld [vmem:[%s3 + $0x50] sm:$0xf]
  %v88 = vld [vmem:[%s3 + $0x54] sm:$0xf]
  %v89 = vld [vmem:[%s3 + $0x58] sm:$0xf]
  %v90 = vld [vmem:[%s3 + $0x5c] sm:$0xf]
  %v91 = vld [vmem:[%s3 + $0x60] sm:$0xf]
  %v92 = vld [vmem:[%s3 + $0x64] sm:$0xf]
  %v93 = vld [vmem:[%s3 + $0x68] sm:$0xf]
  %v94 = vld [vmem:[%s3 + $0x6c] sm:$0xf]
  %v95 = vld [vmem:[%s3 + $0x70] sm:$0xf]
  %v96 = vld [vmem:[%s3 + $0x74] sm:$0xf]
  %v97 = vld [vmem:[%s3 + $0x78] sm:$0xf]
  %v98 = vld [vmem:[%s3 + $0x7c] sm:$0xf]
  %v99 = vld [vmem:[%s3 + $0x80] sm:$0xf]
  %v100 = vld [vmem:[%s3 + $0x84] sm:$0xf]
  %v101 = vld [vmem:[%s3 + $0x88] sm:$0xf]
  %v102 = vld [vmem:[%s3 + $0x8c] sm:$0xf]
  %v103 = vld [vmem:[%s3 + $0x90] sm:$0xf]
  %v104 = vld [vmem:[%s3 + $0x94] sm:$0xf]
  %v105 = vld [vmem:[%s3 + $0x98] sm:$0xf]
  %v106 = vld [vmem:[%s3 + $0x9c] sm:$0xf]
  %v107 = vld [vmem:[%s3 + $0xa0] sm:$0xf]
  %v108 = vld [vmem:[%s3 + $0xa4] sm:$0xf]
  %v109 = vld [vmem:[%s3 + $0xa8] sm:$0xf]
  %v110 = vld [vmem:[%s3 + $0xac] sm:$0xf]
  %v111 = vld [vmem:[%s3 + $0xb0] sm:$0xf]
  %v112 = vld [vmem:[%s3 + $0xb4] sm:$0xf]
  %v113 = vld [vmem:[%s3 + $0xb8] sm:$0xf]
  %v114 = vld [vmem:[%s3 + $0xbc] sm:$0xf]
  %v115 = vld [vmem:[%s3 + $0xc0] sm:$0xf]
  %v116 = vld [vmem:[%s3 + $0xc4] sm:$0xf]
  %v117 = vld [vmem:[%s3 + $0xc8] sm:$0xf]
  %v118 = vld [vmem:[%s3 + $0xcc] sm:$0xf]
  %v119 = vld [vmem:[%s3 + $0xd0] sm:$0xf]
  %v120 = vld [vmem:[%s3 + $0xd4] sm:$0xf]
  %v121 = vld [vmem:[%s3 + $0xd8] sm:$0xf]
  %v122 = vld [vmem:[%s3 + $0xdc] sm:$0xf]
  %v123 = vld [vmem:[%s3 + $0xe0] sm:$0xf]
  %v124 = vld [vmem:[%s3 + $0xe4] sm:$0xf]
  %v125 = vld [vmem:[%s3 + $0xe8] sm:$0xf]
  %v126 = vld [vmem:[%s3 + $0xec] sm:$0xf]
  %v127 = vld [vmem:[%s3 + $0xf0] sm:$0xf]
  %v128 = vld [vmem:[%s3 + $0xf4] sm:$0xf]
  %v129 = vld [vmem:[%s3 + $0xf8] sm:$0xf]
  %v130 = vld [vmem:[%s3 + $0xfc] sm:$0xf]
  %v195 = vunpack.c.l.b16 %v67
  %v196 = vunpack.c.l.b16 %v68
  %v197 = vunpack.c.l.b16 %v69
  %v198 = vunpack.c.l.b16 %v70
  %v199 = vunpack.c.l.b16 %v71
  %v200 = vunpack.c.l.b16 %v72
  %v201 = vunpack.c.l.b16 %v73
  %v202 = vunpack.c.l.b16 %v74
  %v203 = vunpack.c.l.b16 %v75
  %v204 = vunpack.c.l.b16 %v76
  %v205 = vunpack.c.l.b16 %v77
  %v206 = vunpack.c.l.b16 %v78
  %v207 = vunpack.c.l.b16 %v79
  %v208 = vunpack.c.l.b16 %v80
  %v209 = vunpack.c.l.b16 %v81
  %v210 = vunpack.c.l.b16 %v82
  %v211 = vunpack.c.l.b16 %v83
  %v212 = vunpack.c.l.b16 %v84
  %v213 = vunpack.c.l.b16 %v85
  %v214 = vunpack.c.l.b16 %v86
  %v215 = vunpack.c.l.b16 %v87
  %v216 = vunpack.c.l.b16 %v88
  %v217 = vunpack.c.l.b16 %v89
  %v218 = vunpack.c.l.b16 %v90
  %v219 = vunpack.c.l.b16 %v91
  %v220 = vunpack.c.l.b16 %v92
  %v221 = vunpack.c.l.b16 %v93
  %v222 = vunpack.c.l.b16 %v94
  %v223 = vunpack.c.l.b16 %v95
  %v224 = vunpack.c.l.b16 %v96
  %v225 = vunpack.c.l.b16 %v97
  %v226 = vunpack.c.l.b16 %v98
  %v227 = vunpack.c.l.b16 %v99
  %v228 = vunpack.c.l.b16 %v100
  %v229 = vunpack.c.l.b16 %v101
  %v230 = vunpack.c.l.b16 %v102
  %v231 = vunpack.c.l.b16 %v103
  %v232 = vunpack.c.l.b16 %v104
  %v233 = vunpack.c.l.b16 %v105
  %v234 = vunpack.c.l.b16 %v106
  %v235 = vunpack.c.l.b16 %v107
  %v236 = vunpack.c.l.b16 %v108
  %v237 = vunpack.c.l.b16 %v109
  %v238 = vunpack.c.l.b16 %v110
  %v239 = vunpack.c.l.b16 %v111
  %v240 = vunpack.c.l.b16 %v112
  %v241 = vunpack.c.l.b16 %v113
  %v242 = vunpack.c.l.b16 %v114
  %v243 = vunpack.c.l.b16 %v115
  %v244 = vunpack.c.l.b16 %v116
  %v245 = vunpack.c.l.b16 %v117
  %v246 = vunpack.c.l.b16 %v118
  %v247 = vunpack.c.l.b16 %v119
  %v248 = vunpack.c.l.b16 %v120
  %v249 = vunpack.c.l.b16 %v121
  %v250 = vunpack.c.l.b16 %v122
  %v251 = vunpack.c.l.b16 %v123
  %v252 = vunpack.c.l.b16 %v124
  %v253 = vunpack.c.l.b16 %v125
  %v254 = vunpack.c.l.b16 %v126
  %v255 = vunpack.c.l.b16 %v127
  %v256 = vunpack.c.l.b16 %v128
  %v257 = vunpack.c.l.b16 %v129
  %v258 = vunpack.c.l.b16 %v130
  %v259 = vpack.c.b16 %v196, %v195
  %v260 = vpack.c.b16 %v198, %v197
  %v261 = vpack.c.b16 %v200, %v199
  %v262 = vpack.c.b16 %v202, %v201
  %v263 = vpack.c.b16 %v204, %v203
  %v264 = vpack.c.b16 %v206, %v205
  %v265 = vpack.c.b16 %v208, %v207
  %v266 = vpack.c.b16 %v210, %v209
  %v267 = vpack.c.b16 %v212, %v211
  %v268 = vpack.c.b16 %v214, %v213
  %v269 = vpack.c.b16 %v216, %v215
  %v270 = vpack.c.b16 %v218, %v217
  %v271 = vpack.c.b16 %v220, %v219
  %v272 = vpack.c.b16 %v222, %v221
  %v273 = vpack.c.b16 %v224, %v223
  %v274 = vpack.c.b16 %v226, %v225
  %v275 = vpack.c.b16 %v228, %v227
  %v276 = vpack.c.b16 %v230, %v229
  %v277 = vpack.c.b16 %v232, %v231
  %v278 = vpack.c.b16 %v234, %v233
  %v279 = vpack.c.b16 %v236, %v235
  %v280 = vpack.c.b16 %v238, %v237
  %v281 = vpack.c.b16 %v240, %v239
  %v282 = vpack.c.b16 %v242, %v241
  %v283 = vpack.c.b16 %v244, %v243
  %v284 = vpack.c.b16 %v246, %v245
  %v285 = vpack.c.b16 %v248, %v247
  %v286 = vpack.c.b16 %v250, %v249
  %v287 = vpack.c.b16 %v252, %v251
  %v288 = vpack.c.b16 %v254, %v253
  %v289 = vpack.c.b16 %v256, %v255
  %v290 = vpack.c.b16 %v258, %v257
  %323 = vmatpush.bf16.msra.mxu0 %v266
  %324 = vmatpush.bf16.msra.mxu0 %v265
  %325 = vmatpush.bf16.msra.mxu0 %v264
  %326 = vmatpush.bf16.msra.mxu0 %v263
  %327 = vmatpush.bf16.msra.mxu0 %v262
  %328 = vmatpush.bf16.msra.mxu0 %v261
  %329 = vmatpush.bf16.msra.mxu0 %v260
  %330 = vmatpush.bf16.msra.mxu0 %v259
  %331 = vmatmul.bf16.gmra.mxu0 %v63
  %v332 = vpop.f32.mrf.mxu0
  %v333 = vadd.f32 0.0, %v332
  %v334 = vpop.f32.mrf.mxu0
  %335 = vdwg.mxu0
  %336 = vmatpush.bf16.msra.mxu0 %v274
  %337 = vmatpush.bf16.msra.mxu0 %v273
  %338 = vmatpush.bf16.msra.mxu0 %v272
  %339 = vmatpush.bf16.msra.mxu0 %v271
  %340 = vmatpush.bf16.msra.mxu0 %v270
  %341 = vmatpush.bf16.msra.mxu0 %v269
  %342 = vmatpush.bf16.msra.mxu0 %v268
  %343 = vmatpush.bf16.msra.mxu0 %v267
  %344 = vmatmul.bf16.gmra.mxu0 %v64
  %v345 = vpop.f32.mrf.mxu0
  %v346 = vadd.f32 %v333, %v345
  %v347 = vpop.f32.mrf.mxu0
  %348 = vdwg.mxu0
  %349 = vmatpush.bf16.msra.mxu0 %v282
  %350 = vmatpush.bf16.msra.mxu0 %v281
  %351 = vmatpush.bf16.msra.mxu0 %v280
  %352 = vmatpush.bf16.msra.mxu0 %v279
  %353 = vmatpush.bf16.msra.mxu0 %v278
  %354 = vmatpush.bf16.msra.mxu0 %v277
  %355 = vmatpush.bf16.msra.mxu0 %v276
  %356 = vmatpush.bf16.msra.mxu0 %v275
  %357 = vmatmul.bf16.gmra.mxu0 %v65
  %v358 = vpop.f32.mrf.mxu0
  %v359 = vadd.f32 %v346, %v358
  %v360 = vpop.f32.mrf.mxu0
  %361 = vdwg.mxu0
  %362 = vmatpush.bf16.msra.mxu0 %v290
  %363 = vmatpush.bf16.msra.mxu0 %v289
  %364 = vmatpush.bf16.msra.mxu0 %v288
  %365 = vmatpush.bf16.msra.mxu0 %v287
  %366 = vmatpush.bf16.msra.mxu0 %v286
  %367 = vmatpush.bf16.msra.mxu0 %v285
  %368 = vmatpush.bf16.msra.mxu0 %v284
  %369 = vmatpush.bf16.msra.mxu0 %v283
  %370 = vmatmul.bf16.gmra.mxu0 %v66
  %v371 = vpop.f32.mrf.mxu0
  %v372 = vadd.f32 %v359, %v371
  %v373 = vpop.f32.mrf.mxu0
  %374 = vdwg.mxu0
  %v375 = vsub.f32 0.0, %v372
  %v376 = vmul.f32 %v375, 1.442695
  %v377 = vpow.pop %v376
  %v378 = vadd.f32 %v377, 1.0
  %v379 = vrcp.pop %v378
  %vm380 = vcmask 1024
  %381 = vst.msk [vmem:[%s4] sm:$0x3] %vm380, %v379
  // Predicated region
  $region18: #{discriminator_forward.7} parent=0 // pred_check
    _
  $region19: #{discriminator_forward.7} parent=0 // pred_check_branch
    %383 = sbr.rel (0) target = $region21
  $region20: #{discriminator_forward.7} parent=0 // pred_region
    _
  $region21: #{discriminator_forward.7} parent=0 // pred_fallthru
    _
  // Predicated region
  $region22: #{discriminator_forward.7} parent=0 // pred_check
    _
  $region23: #{discriminator_forward.7} parent=0 // pred_check_branch
    %385 = sbr.rel (0) target = $region25
  $region24: #{discriminator_forward.7} parent=0 // pred_region
    _
  $region25: #{discriminator_forward.7} parent=0 // pred_fallthru
    _

// kernel: discriminator_forward.6
$region0: #{discriminator_forward.6}
  #allocation0 [shape = 'u32[]', space=smem, size = 0x4, offset = 0x4, fixed_abs, tag = 'smem constant byte address 0x4 - core index']
  #allocation1 [shape = 'u32[72,128]{1,0:T(1,128)}', space=vmem, size = 0x9000, scoped, tag = 'internal scratch']
  %s0 = inlined_call_operand.vmem [shape: f32[1,64], index: 0, kind: input, shape index: {}]
  %s1 = inlined_call_operand.vmem [shape: f32[1,64], index: 1, kind: input, shape index: {}]
  %s2 = inlined_call_operand.vmem [shape: bf16[2,5,5,64], index: 2, kind: input, shape index: {}]
  %s3 = inlined_call_operand.vmem [shape: bf16[4,64,32], index: 3, kind: input, shape index: {}]
  %s4 = inlined_call_operand.vmem [shape: bf16[2,4,4,32], index: 4, kind: output, shape index: {0}]
  %s5 = inlined_call_operand.vmem [shape: f32[2,1,32], index: 5, kind: output, shape index: {1}]
  %s6 = inlined_call_operand.vmem [shape: f32[2,1,32], index: 6, kind: output, shape index: {2}]
  %7 = xla_tuple %s4, %s5, %s6
  %s8 = sld [smem:[#allocation0]]
  $region72: #{discriminator_forward.6} parent=0
    _
  %s10 = ssub.s32 1, %s8
  %s11 = scalar_select 0, %s10, %s8
  loop: start=0, step=1, limit=4
  $region2: #{discriminator_forward.6} parent=0 // loop_pre_header
    _
  $region3: #{discriminator_forward.6} parent=0 // loop_header
    %s13 = sphi 0, %s17
    %p14 = scmp.ge.s32.totalorder %s13, 4
    %s21 = sphi 0, %s21
    %s23 = sphi 0, %s21
    %s24 = sphi 0, %s23
    %s38 = sphi 0, %s24
    %s42 = sphi 0, %s42
    %s44 = sphi 0, %s42
    %s45 = sphi 0, %s44
    %s59 = sphi 0, %s45
    %s65 = sphi 0, %s67
    %s68 = sphi 0, %s65
    %s69 = sphi 0, %s68
    %s85 = sphi 0, %s69
    %s89 = sphi 0, %s89
    %s91 = sphi 0, %s89
    %s92 = sphi 0, %s91
    %s106 = sphi 0, %s92
    %s112 = sphi 0, %s114
    %s115 = sphi 0, %s112
    %s116 = sphi 0, %s115
    %s132 = sphi 0, %s116
    %s138 = sphi 0, %s140
    %s141 = sphi 0, %s138
    %s142 = sphi 0, %s141
    %s158 = sphi 0, %s142
    %s164 = sphi 0, %s166
    %s167 = sphi 0, %s164
    %s168 = sphi 0, %s167
    %s184 = sphi 0, %s168
  $region4: #{discriminator_forward.6} parent=0 // loop_header_branch
    %16 = sbr.rel (%p14) target = $region8
  $region5: #{discriminator_forward.6} parent=0 // loop_body
    %s18 = ssub.s32 %s13, 1
    %s19 = ssub.s32 %s13, 2
    %s20 = sadd.s32 %s13, 1
    %s22 = sadd.s32 %s21, 1
    %p25 = scmp.eq.s32.totalorder %s13, 1
    %p26 = scmp.ne.s32.totalorder %s21, %s23
    %p27 = scmp.eq.s32.totalorder %s13, 0
    %p28 = por %p26, %p27
    %p29 = scmp.ne.s32.totalorder %s21, %s23
    %p30 = scmp.eq.s32.totalorder %s18, 1
    %p31 = por %p29, %p30
    %p32 = scmp.ne.s32.totalorder %s23, %s24
    %p33 = scmp.eq.s32.totalorder %s18, 0
    %p34 = por %p32, %p33
    %p35 = scmp.ne.s32.totalorder %s23, %s24
    %p36 = scmp.eq.s32.totalorder %s19, 1
    %p37 = por %p35, %p36
    %p39 = scmp.ne.s32.totalorder %s24, %s38
    %p40 = scmp.eq.s32.totalorder %s19, 0
    %p41 = por %p39, %p40
    %s43 = sadd.s32 %s42, 1
    %p46 = scmp.eq.s32.totalorder %s13, 1
    %p47 = scmp.ne.s32.totalorder %s42, %s44
    %p48 = scmp.eq.s32.totalorder %s13, 0
    %p49 = por %p47, %p48
    %p50 = scmp.ne.s32.totalorder %s42, %s44
    %p51 = scmp.eq.s32.totalorder %s18, 1
    %p52 = por %p50, %p51
    %p53 = scmp.ne.s32.totalorder %s44, %s45
    %p54 = scmp.eq.s32.totalorder %s18, 0
    %p55 = por %p53, %p54
    %p56 = scmp.ne.s32.totalorder %s44, %s45
    %p57 = scmp.eq.s32.totalorder %s19, 1
    %p58 = por %p56, %p57
    %p60 = scmp.ne.s32.totalorder %s45, %s59
    %p61 = scmp.eq.s32.totalorder %s19, 0
    %p62 = por %p60, %p61
    %s63 = ssub.s32 %s13, %s20
    %p64 = scmp.eq.s32.totalorder %s63, 0
    %s66 = sadd.s32 %s65, 1
    %s67 = scalar_select %p64, %s65, %s66
    %p70 = pneg %p64
    %p71 = scmp.eq.s32.totalorder %s13, 1
    %p72 = por %p70, %p71
    %p73 = scmp.ne.s32.totalorder %s65, %s68
    %p74 = scmp.eq.s32.totalorder %s13, 0
    %p75 = por %p73, %p74
    %p76 = scmp.ne.s32.totalorder %s65, %s68
    %p77 = scmp.eq.s32.totalorder %s18, 1
    %p78 = por %p76, %p77
    %p79 = scmp.ne.s32.totalorder %s68, %s69
    %p80 = scmp.eq.s32.totalorder %s18, 0
    %p81 = por %p79, %p80
    %p82 = scmp.ne.s32.totalorder %s68, %s69
    %p83 = scmp.eq.s32.totalorder %s19, 1
    %p84 = por %p82, %p83
    %p86 = scmp.ne.s32.totalorder %s69, %s85
    %p87 = scmp.eq.s32.totalorder %s19, 0
    %p88 = por %p86, %p87
    %s90 = sadd.s32 %s89, 1
    %p93 = scmp.eq.s32.totalorder %s13, 1
    %p94 = scmp.ne.s32.totalorder %s89, %s91
    %p95 = scmp.eq.s32.totalorder %s13, 0
    %p96 = por %p94, %p95
    %p97 = scmp.ne.s32.totalorder %s89, %s91
    %p98 = scmp.eq.s32.totalorder %s18, 1
    %p99 = por %p97, %p98
    %p100 = scmp.ne.s32.totalorder %s91, %s92
    %p101 = scmp.eq.s32.totalorder %s18, 0
    %p102 = por %p100, %p101
    %p103 = scmp.ne.s32.totalorder %s91, %s92
    %p104 = scmp.eq.s32.totalorder %s19, 1
    %p105 = por %p103, %p104
    %p107 = scmp.ne.s32.totalorder %s92, %s106
    %p108 = scmp.eq.s32.totalorder %s19, 0
    %p109 = por %p107, %p108
    %s110 = ssub.s32 %s13, %s20
    %p111 = scmp.eq.s32.totalorder %s110, 0
    %s113 = sadd.s32 %s112, 1
    %s114 = scalar_select %p111, %s112, %s113
    %p117 = pneg %p111
    %p118 = scmp.eq.s32.totalorder %s13, 1
    %p119 = por %p117, %p118
    %p120 = scmp.ne.s32.totalorder %s112, %s115
    %p121 = scmp.eq.s32.totalorder %s13, 0
    %p122 = por %p120, %p121
    %p123 = scmp.ne.s32.totalorder %s112, %s115
    %p124 = scmp.eq.s32.totalorder %s18, 1
    %p125 = por %p123, %p124
    %p126 = scmp.ne.s32.totalorder %s115, %s116
    %p127 = scmp.eq.s32.totalorder %s18, 0
    %p128 = por %p126, %p127
    %p129 = scmp.ne.s32.totalorder %s115, %s116
    %p130 = scmp.eq.s32.totalorder %s19, 1
    %p131 = por %p129, %p130
    %p133 = scmp.ne.s32.totalorder %s116, %s132
    %p134 = scmp.eq.s32.totalorder %s19, 0
    %p135 = por %p133, %p134
    %s136 = ssub.s32 %s13, %s20
    %p137 = scmp.eq.s32.totalorder %s136, 0
    %s139 = sadd.s32 %s138, 1
    %s140 = scalar_select %p137, %s138, %s139
    %p143 = pneg %p137
    %p144 = scmp.eq.s32.totalorder %s13, 1
    %p145 = por %p143, %p144
    %p146 = scmp.ne.s32.totalorder %s138, %s141
    %p147 = scmp.eq.s32.totalorder %s13, 0
    %p148 = por %p146, %p147
    %p149 = scmp.ne.s32.totalorder %s138, %s141
    %p150 = scmp.eq.s32.totalorder %s18, 1
    %p151 = por %p149, %p150
    %p152 = scmp.ne.s32.totalorder %s141, %s142
    %p153 = scmp.eq.s32.totalorder %s18, 0
    %p154 = por %p152, %p153
    %p155 = scmp.ne.s32.totalorder %s141, %s142
    %p156 = scmp.eq.s32.totalorder %s19, 1
    %p157 = por %p155, %p156
    %p159 = scmp.ne.s32.totalorder %s142, %s158
    %p160 = scmp.eq.s32.totalorder %s19, 0
    %p161 = por %p159, %p160
    %s162 = ssub.s32 %s13, %s20
    %p163 = scmp.eq.s32.totalorder %s162, 0
    %s165 = sadd.s32 %s164, 1
    %s166 = scalar_select %p163, %s164, %s165
    %p169 = pneg %p163
    %p170 = scmp.eq.s32.totalorder %s13, 1
    %p171 = por %p169, %p170
    %p172 = scmp.ne.s32.totalorder %s164, %s167
    %p173 = scmp.eq.s32.totalorder %s13, 0
    %p174 = por %p172, %p173
    %p175 = scmp.ne.s32.totalorder %s164, %s167
    %p176 = scmp.eq.s32.totalorder %s18, 1
    %p177 = por %p175, %p176
    %p178 = scmp.ne.s32.totalorder %s167, %s168
    %p179 = scmp.eq.s32.totalorder %s18, 0
    %p180 = por %p178, %p179
    %p181 = scmp.ne.s32.totalorder %s167, %s168
    %p182 = scmp.eq.s32.totalorder %s19, 1
    %p183 = por %p181, %p182
    %p185 = scmp.ne.s32.totalorder %s168, %s184
    %p186 = scmp.eq.s32.totalorder %s19, 0
    %p187 = por %p185, %p186
    %p188 = scmp.le.s32.totalorder 1, %s13
    %p189 = scmp.lt.s32.totalorder %s13, 3
    %p190 = pnand %p188, %p189
    %p191 = pneg %p190
    // Predicated region
    $region9: #{discriminator_forward.6} parent=5 // pred_check
      _
    $region10: #{discriminator_forward.6} parent=5 // pred_check_branch
      %193 = sbr.rel (%p190) target = $region12
    $region11: #{discriminator_forward.6} parent=5 // pred_region
      %s194 = ssub.s32 %s13, 1
      // Predicated region
      $region13: #{discriminator_forward.6} parent=11 // pred_check
        %p195 = pneg %p34
      $region14: #{discriminator_forward.6} parent=11 // pred_check_branch
        %197 = sbr.rel (%p195) target = $region16
      $region15: #{discriminator_forward.6} parent=11 // pred_region
        _
      $region16: #{discriminator_forward.6} parent=11 // pred_fallthru
        _
      // Predicated region
      $region17: #{discriminator_forward.6} parent=11 // pred_check
        %p198 = pneg %p55
      $region18: #{discriminator_forward.6} parent=11 // pred_check_branch
        %200 = sbr.rel (%p198) target = $region20
      $region19: #{discriminator_forward.6} parent=11 // pred_region
        _
      $region20: #{discriminator_forward.6} parent=11 // pred_fallthru
        _
      // Predicated region
      $region21: #{discriminator_forward.6} parent=11 // pred_check
        %p201 = pneg %p102
      $region22: #{discriminator_forward.6} parent=11 // pred_check_branch
        %203 = sbr.rel (%p201) target = $region24
      $region23: #{discriminator_forward.6} parent=11 // pred_region
        _
      $region24: #{discriminator_forward.6} parent=11 // pred_fallthru
        _
    $region12: #{discriminator_forward.6} parent=5 // pred_fallthru
      _
    %p204 = scmp.lt.s32.totalorder %s13, 2
    // Predicated region
    $region25: #{discriminator_forward.6} parent=5 // pred_check
      %p205 = pneg %p204
    $region26: #{discriminator_forward.6} parent=5 // pred_check_branch
      %207 = sbr.rel (%p205) target = $region28
    $region27: #{discriminator_forward.6} parent=5 // pred_region
      // Predicated region
      $region29: #{discriminator_forward.6} parent=27 // pred_check
        %p208 = pneg %p75
      $region30: #{discriminator_forward.6} parent=27 // pred_check_branch
        %210 = sbr.rel (%p208) target = $region32
      $region31: #{discriminator_forward.6} parent=27 // pred_region
        %p211 = scmp.lt.s32.totalorder %s13, 1
        %s212 = scalar_select %p211, %s13, 1
        %s213 = smul.addr %s212, 5
        %s214 = smul.addr %s213, 4
        %s215 = scalar_lea.vmem %s2, %s214
      $region32: #{discriminator_forward.6} parent=27 // pred_fallthru
        _
    $region28: #{discriminator_forward.6} parent=5 // pred_fallthru
      _
    %p216 = scmp.le.s32.totalorder 1, %s13
    %p217 = scmp.lt.s32.totalorder %s13, 3
    %p218 = pnand %p216, %p217
    %p219 = pneg %p218
    // Predicated region
    $region33: #{discriminator_forward.6} parent=5 // pred_check
      _
    $region34: #{discriminator_forward.6} parent=5 // pred_check_branch
      %221 = sbr.rel (%p218) target = $region36
    $region35: #{discriminator_forward.6} parent=5 // pred_region
      %s222 = ssub.s32 %s13, 1
      %p223 = pneg %p34
      %p224 = pneg %p31
      %p225 = pneg %p55
      %p226 = pneg %p52
      %p227 = scmp.lt.s32.totalorder %s18, 1
      %s228 = scalar_select %p227, %s18, 1
      %s229 = smul.addr %s228, 5
      %s230 = smul.addr %s229, 4
      %s231 = scalar_lea.vmem %s2, %s230
      %p232 = pneg %p81
      %p233 = pneg %p78
      %p234 = pneg %p102
      %p235 = pneg %p99
      %p236 = pneg %p128
      %p237 = pneg %p125
      %p238 = scmp.lt.s32.totalorder %s18, 1
      %s239 = scalar_select %p238, %s18, 1
      %s240 = smul.addr %s239, 4
      %s241 = smul.addr %s240, 2
      %s242 = scalar_lea.vmem %s4, %s241
      %p243 = pneg %p154
      %p244 = pneg %p151
      %p245 = scmp.lt.s32.totalorder %s18, 1
      %s246 = scalar_select %p245, %s18, 1
      %s247 = scalar_lea.vmem %s5, %s246
      %p248 = pneg %p180
      %p249 = pneg %p177
      %p250 = scmp.lt.s32.totalorder %s18, 1
      %s251 = scalar_select %p250, %s18, 1
      %s252 = scalar_lea.vmem %s6, %s251
      %p253 = scmp.lt.s32.totalorder %s18, 1
      %s254 = scalar_select %p253, %s18, 1
      %s255 = smul.addr %s254, 5
      %s256 = smul.addr %s255, 4
      %s257 = scalar_lea.vmem %s2, %s256
      %p258 = scmp.lt.s32.totalorder %s18, 1
      %s259 = scalar_select %p258, %s18, 1
      %s260 = smul.addr %s259, 4
      %s261 = smul.addr %s260, 2
      %s262 = scalar_lea.vmem %s4, %s261
      %p263 = scmp.lt.s32.totalorder %s18, 1
      %s264 = scalar_select %p263, %s18, 1
      %s265 = scalar_lea.vmem %s5, %s264
      %p266 = scmp.lt.s32.totalorder %s18, 1
      %s267 = scalar_select %p266, %s18, 1
      %s268 = scalar_lea.vmem %s6, %s267
      %vm270 = vcmask 253952
      %271 = vst.msk [vmem:[%s265] sm:$0x1] %vm270, 0.0
      %272 = vst.msk [vmem:[%s268] sm:$0x1] %vm270, 0.0
      loop: start=0, step=1, limit=4
      $region37: #{discriminator_forward.6} parent=35 // loop_pre_header
        _
      $region38: #{discriminator_forward.6} parent=35 // loop_header
        %s274 = sphi 0, %s278
        %p275 = scmp.ge.s32.totalorder %s274, 4
      $region39: #{discriminator_forward.6} parent=35 // loop_header_branch
        %277 = sbr.rel (%p275) target = $region43
      $region40: #{discriminator_forward.6} parent=35 // loop_body
        %s279 = smul.addr %s274, 4
        %s280 = scalar_lea.vmem %s257, %s279
        %v281 = vld [vmem:[%s280] sm:$0x3]
        %v282 = vunpack.c.l.bf16 %v281
        %v283 = vld [vmem:[%s0] sm:$0x1]
        %v285 = vperm.slane %v283, 0
        %v287 = vmul.f32 %v282, %v285
        %v288 = vld [vmem:[%s1] sm:$0x1]
        %v290 = vperm.slane %v288, 0
        %v292 = vadd.f32 %v287, %v290
        %vm293 = vcmp.gt.f32.partialorder %v292, 0.0
        %v294 = vmul.f32 %v292, 0.2
        %v295 = vsel %vm293, %v292, %v294
        %v296 = vpack.c.bf16 %v295, %v295
        %v297 = vld [vmem:[%s3] sm:$0xf]
        %v298 = vld [vmem:[%s3 + $0x4] sm:$0xf]
        %v299 = vld [vmem:[%s3 + $0x8] sm:$0xf]
        %v300 = vld [vmem:[%s3 + $0xc] sm:$0xf]
        %v301 = vld [vmem:[%s3 + $0x10] sm:$0xf]
        %v302 = vld [vmem:[%s3 + $0x14] sm:$0xf]
        %v303 = vld [vmem:[%s3 + $0x18] sm:$0xf]
        %v304 = vld [vmem:[%s3 + $0x1c] sm:$0xf]
        %v305 = vld [vmem:[%s280] sm:$0x7]
        %v306 = vunpack.c.l.bf16 %v305
        %v307 = vmul.f32 %v306, %v285
        %v308 = vadd.f32 %v307, %v290
        %vm309 = vcmp.gt.f32.partialorder %v308, 0.0
        %v310 = vmul.f32 %v308, 0.2
        %v311 = vsel %vm309, %v308, %v310
        %v312 = vpack.c.bf16 %v311, %v311
        %s313 = scalar_lea.vmem %s3, 32
        %v314 = vld [vmem:[%s313] sm:$0xf]
        %v315 = vld [vmem:[%s313 + $0x4] sm:$0xf]
        %v316 = vld [vmem:[%s313 + $0x8] sm:$0xf]
        %v317 = vld [vmem:[%s313 + $0xc] sm:$0xf]
        %v318 = vld [vmem:[%s313 + $0x10] sm:$0xf]
        %v319 = vld [vmem:[%s313 + $0x14] sm:$0xf]
        %v320 = vld [vmem:[%s313 + $0x18] sm:$0xf]
        %v321 = vld [vmem:[%s313 + $0x1c] sm:$0xf]
        %v323 = vshrl.u32 %v312, 16
        %v325 = vshll.u32 %v312, 16
        %v327 = vrot.slane %v325, 1
        %v328 = vor.u32 %v323, %v327
        %v337 = vunpack.c.l.b16 %v314
        %v338 = vunpack.c.l.b16 %v315
        %v339 = vunpack.c.l.b16 %v316
        %v340 = vunpack.c.l.b16 %v317
        %v341 = vunpack.c.l.b16 %v318
        %v342 = vunpack.c.l.b16 %v319
        %v343 = vunpack.c.l.b16 %v320
        %v344 = vunpack.c.l.b16 %v321
        %v345 = vpack.c.b16 %v338, %v337
        %v346 = vpack.c.b16 %v340, %v339
        %v347 = vpack.c.b16 %v342, %v341
        %v348 = vpack.c.b16 %v344, %v343
        %vm353 = vcmask 523264
        %v355 = vsel %vm353, %v328, 0
        %357 = vmatpush.bf16.msra.mxu0 0
        %358 = vmatpush.bf16.msra.mxu0 0
        %359 = vmatpush.bf16.msra.mxu0 0
        %360 = vmatpush.bf16.msra.mxu0 0
        %361 = vmatpush.bf16.msra.mxu0 %v348
        %362 = vmatpush.bf16.msra.mxu0 %v347
        %363 = vmatpush.bf16.msra.mxu0 %v346
        %364 = vmatpush.bf16.msra.mxu0 %v345
        %365 = vmatmul.bf16.gmra.mxu0 %v355
        %v366 = vpop.f32.mrf.mxu0
        %v367 = vadd.f32 0.0, %v366
        %v368 = vpop.f32.mrf.mxu0
        %369 = vdwg.mxu0
        %v378 = vunpack.c.l.b16 %v297
        %v379 = vunpack.c.l.b16 %v298
        %v380 = vunpack.c.l.b16 %v299
        %v381 = vunpack.c.l.b16 %v300
        %v382 = vunpack.c.l.b16 %v301
        %v383 = vunpack.c.l.b16 %v302
        %v384 = vunpack.c.l.b16 %v303
        %v385 = vunpack.c.l.b16 %v304
        %v386 = vpack.c.b16 %v379, %v378
        %v387 = vpack.c.b16 %v381, %v380
        %v388 = vpack.c.b16 %v383, %v382
        %v389 = vpack.c.b16 %v385, %v384
        %v395 = vsel %vm353, %v296, 0
        %397 = vmatpush.bf16.msra.mxu0 0
        %398 = vmatpush.bf16.msra.mxu0 0
        %399 = vmatpush.bf16.msra.mxu0 0
        %400 = vmatpush.bf16.msra.mxu0 0
        %401 = vmatpush.bf16.msra.mxu0 %v389
        %402 = vmatpush.bf16.msra.mxu0 %v388
        %403 = vmatpush.bf16.msra.mxu0 %v387
        %404 = vmatpush.bf16.msra.mxu0 %v386
        %405 = vmatmul.bf16.gmra.mxu0 %v395
        %v406 = vpop.f32.mrf.mxu0
        %v407 = vadd.f32 %v367, %v406
        %v408 = vpop.f32.mrf.mxu0
        %409 = vdwg.mxu0
        %s410 = sadd.s32 %s274, 1
        %s411 = smul.addr %s410, 4
        %s412 = scalar_lea.vmem %s257, %s411
        %v413 = vld [vmem:[%s412] sm:$0x3]
        %v414 = vunpack.c.l.bf16 %v413
        %v415 = vmul.f32 %v414, %v285
        %v416 = vadd.f32 %v415, %v290
        %vm417 = vcmp.gt.f32.partialorder %v416, 0.0
        %v418 = vmul.f32 %v416, 0.2
        %v419 = vsel %vm417, %v416, %v418
        %v420 = vpack.c.bf16 %v419, %v419
        %s421 = scalar_lea.vmem %s3, 64
        %v422 = vld [vmem:[%s421] sm:$0xf]
        %v423 = vld [vmem:[%s421 + $0x4] sm:$0xf]
        %v424 = vld [vmem:[%s421 + $0x8] sm:$0xf]
        %v425 = vld [vmem:[%s421 + $0xc] sm:$0xf]
        %v426 = vld [vmem:[%s421 + $0x10] sm:$0xf]
        %v427 = vld [vmem:[%s421 + $0x14] sm:$0xf]
        %v428 = vld [vmem:[%s421 + $0x18] sm:$0xf]
        %v429 = vld [vmem:[%s421 + $0x1c] sm:$0xf]
        %v438 = vunpack.c.l.b16 %v422
        %v439 = vunpack.c.l.b16 %v423
        %v440 = vunpack.c.l.b16 %v424
        %v441 = vunpack.c.l.b16 %v425
        %v442 = vunpack.c.l.b16 %v426
        %v443 = vunpack.c.l.b16 %v427
        %v444 = vunpack.c.l.b16 %v428
        %v445 = vunpack.c.l.b16 %v429
        %v446 = vpack.c.b16 %v439, %v438
        %v447 = vpack.c.b16 %v441, %v440
        %v448 = vpack.c.b16 %v443, %v442
        %v449 = vpack.c.b16 %v445, %v444
        %v455 = vsel %vm353, %v420, 0
        %457 = vmatpush.bf16.msra.mxu0 0
        %458 = vmatpush.bf16.msra.mxu0 0
        %459 = vmatpush.bf16.msra.mxu0 0
        %460 = vmatpush.bf16.msra.mxu0 0
        %461 = vmatpush.bf16.msra.mxu0 %v449
        %462 = vmatpush.bf16.msra.mxu0 %v448
        %463 = vmatpush.bf16.msra.mxu0 %v447
        %464 = vmatpush.bf16.msra.mxu0 %v446
        %465 = vmatmul.bf16.gmra.mxu0 %v455
        %v466 = vpop.f32.mrf.mxu0
        %v467 = vadd.f32 0.0, %v466
        %v468 = vpop.f32.mrf.mxu0
        %469 = vdwg.mxu0
        %v470 = vadd.f32 %v407, %v467
        %v471 = vld [vmem:[%s412] sm:$0x7]
        %v472 = vunpack.c.l.bf16 %v471
        %v473 = vmul.f32 %v472, %v285
        %v474 = vadd.f32 %v473, %v290
        %vm475 = vcmp.gt.f32.partialorder %v474, 0.0
        %v476 = vmul.f32 %v474, 0.2
        %v477 = vsel %vm475, %v474, %v476
        %v478 = vpack.c.bf16 %v477, %v477
        %s479 = scalar_lea.vmem %s3, 96
        %v480 = vld [vmem:[%s479] sm:$0xf]
        %v481 = vld [vmem:[%s479 + $0x4] sm:$0xf]
        %v482 = vld [vmem:[%s479 + $0x8] sm:$0xf]
        %v483 = vld [vmem:[%s479 + $0xc] sm:$0xf]
        %v484 = vld [vmem:[%s479 + $0x10] sm:$0xf]
        %v485 = vld [vmem:[%s479 + $0x14] sm:$0xf]
        %v486 = vld [vmem:[%s479 + $0x18] sm:$0xf]
        %v487 = vld [vmem:[%s479 + $0x1c] sm:$0xf]
        %v489 = vshrl.u32 %v478, 16
        %v491 = vshll.u32 %v478, 16
        %v493 = vrot.slane %v491, 1
        %v494 = vor.u32 %v489, %v493
        %v503 = vunpack.c.l.b16 %v480
        %v504 = vunpack.c.l.b16 %v481
        %v505 = vunpack.c.l.b16 %v482
        %v506 = vunpack.c.l.b16 %v483
        %v507 = vunpack.c.l.b16 %v484
        %v508 = vunpack.c.l.b16 %v485
        %v509 = vunpack.c.l.b16 %v486
        %v510 = vunpack.c.l.b16 %v487
        %v511 = vpack.c.b16 %v504, %v503
        %v512 = vpack.c.b16 %v506, %v505
        %v513 = vpack.c.b16 %v508, %v507
        %v514 = vpack.c.b16 %v510, %v509
        %v520 = vsel %vm353, %v494, 0
        %522 = vmatpush.bf16.msra.mxu0 0
        %523 = vmatpush.bf16.msra.mxu0 0
        %524 = vmatpush.bf16.msra.mxu0 0
        %525 = vmatpush.bf16.msra.mxu0 0
        %526 = vmatpush.bf16.msra.mxu0 %v514
        %527 = vmatpush.bf16.msra.mxu0 %v513
        %528 = vmatpush.bf16.msra.mxu0 %v512
        %529 = vmatpush.bf16.msra.mxu0 %v511
        %530 = vmatmul.bf16.gmra.mxu0 %v520
        %v531 = vpop.f32.mrf.mxu0
        %v532 = vadd.f32 0.0, %v531
        %v533 = vpop.f32.mrf.mxu0
        %534 = vdwg.mxu0
        %v535 = vadd.f32 %v470, %v532
        %v536 = vpack.c.bf16 %v535, %v535
        %s537 = smul.addr %s274, 2
        %s538 = scalar_lea.vmem %s262, %s537
        %vm539 = vcmask 254976
        %540 = vst.msk [vmem:[%s538] sm:$0x3] %vm539, %v536
        %v541 = vld [vmem:[%s265] sm:$0x1]
        %vm542 = vcmask 257024
        %v543 = vsel %vm542, %v535, 0.0
        %v544 = vrot.slane %v543, 4
        %v545 = vadd.f32 %v543, %v544
        %v546 = vrot.slane %v545, 2
        %v547 = vadd.f32 %v545, %v546
        %v548 = vrot.slane %v547, 1
        %v549 = vadd.f32 %v547, %v548
        %v550 = vadd.f32 %v541, %v549
        %551 = vst.msk [vmem:[%s265] sm:$0x1] %vm270, %v550
        %v552 = vld [vmem:[%s268] sm:$0x1]
        %v553 = vmul.f32 %v535, %v535
        %v554 = vsel %vm542, %v553, 0.0
        %v555 = vrot.slane %v554, 4
        %v556 = vadd.f32 %v554, %v555
        %v557 = vrot.slane %v556, 2
        %v558 = vadd.f32 %v556, %v557
        %v559 = vrot.slane %v558, 1
        %v560 = vadd.f32 %v558, %v559
        %v561 = vadd.f32 %v552, %v560
        %562 = vst.msk [vmem:[%s268] sm:$0x1] %vm270, %v561
      $region41: #{discriminator_forward.6} parent=35 // loop_footer
        %s278 = sadd.s32 1, %s274
      $region42: #{discriminator_forward.6} parent=35 // loop_footer_branch
        %273 = sbr.rel target = $region38
      $region43: #{discriminator_forward.6} parent=35 // loop_exit
        _
      %p563 = scmp.lt.s32.totalorder %s18, 1
      %s564 = scalar_select %p563, %s18, 1
      %s565 = smul.addr %s564, 4
      %s566 = smul.addr %s565, 2
      %s567 = scalar_lea.vmem %s4, %s566
      %p568 = scmp.lt.s32.totalorder %s18, 1
      %s569 = scalar_select %p568, %s18, 1
      %s570 = scalar_lea.vmem %s5, %s569
      %p571 = scmp.lt.s32.totalorder %s18, 1
      %s572 = scalar_select %p571, %s18, 1
      %s573 = scalar_lea.vmem %s6, %s572
      // Predicated region
      $region44: #{discriminator_forward.6} parent=35 // pred_check
        %p574 = pneg %p125
      $region45: #{discriminator_forward.6} parent=35 // pred_check_branch
        %576 = sbr.rel (%p574) target = $region47
      $region46: #{discriminator_forward.6} parent=35 // pred_region
        _
      $region47: #{discriminator_forward.6} parent=35 // pred_fallthru
        _
      // Predicated region
      $region48: #{discriminator_forward.6} parent=35 // pred_check
        %p577 = pneg %p151
      $region49: #{discriminator_forward.6} parent=35 // pred_check_branch
        %579 = sbr.rel (%p577) target = $region51
      $region50: #{discriminator_forward.6} parent=35 // pred_region
        _
      $region51: #{discriminator_forward.6} parent=35 // pred_fallthru
        _
      // Predicated region
      $region52: #{discriminator_forward.6} parent=35 // pred_check
        %p580 = pneg %p177
      $region53: #{discriminator_forward.6} parent=35 // pred_check_branch
        %582 = sbr.rel (%p580) target = $region55
      $region54: #{discriminator_forward.6} parent=35 // pred_region
        _
      $region55: #{discriminator_forward.6} parent=35 // pred_fallthru
        _
    $region36: #{discriminator_forward.6} parent=5 // pred_fallthru
      _
    %p583 = scmp.le.s32.totalorder 2, %s13
    // Predicated region
    $region56: #{discriminator_forward.6} parent=5 // pred_check
      %p584 = pneg %p583
    $region57: #{discriminator_forward.6} parent=5 // pred_check_branch
      %586 = sbr.rel (%p584) target = $region59
    $region58: #{discriminator_forward.6} parent=5 // pred_region
      %s587 = ssub.s32 %s13, 2
      // Predicated region
      $region60: #{discriminator_forward.6} parent=58 // pred_check
        %p588 = pneg %p131
      $region61: #{discriminator_forward.6} parent=58 // pred_check_branch
        %590 = sbr.rel (%p588) target = $region63
      $region62: #{discriminator_forward.6} parent=58 // pred_region
        %p591 = scmp.lt.s32.totalorder %s19, 1
        %s592 = scalar_select %p591, %s19, 1
        %s593 = smul.addr %s592, 4
        %s594 = smul.addr %s593, 2
        %s595 = scalar_lea.vmem %s4, %s594
      $region63: #{discriminator_forward.6} parent=58 // pred_fallthru
        _
      // Predicated region
      $region64: #{discriminator_forward.6} parent=58 // pred_check
        %p596 = pneg %p157
      $region65: #{discriminator_forward.6} parent=58 // pred_check_branch
        %598 = sbr.rel (%p596) target = $region67
      $region66: #{discriminator_forward.6} parent=58 // pred_region
        %p599 = scmp.lt.s32.totalorder %s19, 1
        %s600 = scalar_select %p599, %s19, 1
        %s601 = scalar_lea.vmem %s5, %s600
      $region67: #{discriminator_forward.6} parent=58 // pred_fallthru
        _
      // Predicated region
      $region68: #{discriminator_forward.6} parent=58 // pred_check
        %p602 = pneg %p183
      $region69: #{discriminator_forward.6} parent=58 // pred_check_branch
        %604 = sbr.rel (%p602) target = $region71
      $region70: #{discriminator_forward.6} parent=58 // pred_region
        %p605 = scmp.lt.s32.totalorder %s19, 1
        %s606 = scalar_select %p605, %s19, 1
        %s607 = scalar_lea.vmem %s6, %s606
      $region71: #{discriminator_forward.6} parent=58 // pred_fallthru
        _
    $region59: #{discriminator_forward.6} parent=5 // pred_fallthru
      _
  $region6: #{discriminator_forward.6} parent=0 // loop_footer
    %s17 = sadd.s32 1, %s13
  $region7: #{discriminator_forward.6} parent=0 // loop_footer_branch
    %12 = sbr.rel target = $region3
  $region8: #{discriminator_forward.6} parent=0 // loop_exit
    _

</llo_original>
